<compile_context>
chip_gen: v7x
topology: tpu7x:2x2x1
jax: 0.10.0
libtpu: 0.0.40
codegen_flags: <defaults>
</compile_context>

<pallas_src>
import functools

import jax
import jax.numpy as jnp
from jax.experimental import pallas as pl
from jax.experimental.pallas import tpu as pltpu

_NEG = -1.0e30  # stands in for the -inf padding of torch max_pool2d


# --------------------------------------------------------------------------
# small in-kernel helpers
# --------------------------------------------------------------------------
def _one_minus_softmax(logits):
    """(C, h, W) logits (any float dtype) -> f32  1 - softmax over channels."""
    logits = logits.astype(jnp.float32)
    m = jnp.max(logits, axis=0, keepdims=True)
    e = jnp.exp(logits - m)
    denom = jnp.sum(e, axis=0, keepdims=True)
    # EUP reciprocal instead of a full-tensor VALU divide.
    return 1.0 - e * pl.reciprocal(denom, approx=True)


def _one_minus_onehot(labels, n_classes):
    """(h, W) int labels -> (C, h, W) f32 = 1 - one_hot (no (C,h,W) int iota)."""
    # TODO(synk): on v6e/v7x this branch could run in bf16 ({0,1} values are
    # exact); kept in f32 because v5e's VPU has no bf16 path.
    cls = jax.lax.broadcasted_iota(jnp.int32, (n_classes, 1, 1), 0)
    return jnp.where(cls == labels[None, :, :], 0.0, 1.0).astype(jnp.float32)


def _maxpool_w(x, k):
    """Stride-1 'same' max pool along the last (lane) axis, -inf padding."""
    p = (k - 1) // 2
    if p == 0:
        return x
    w = x.shape[-1]
    if w % 128 == 0:
        # Lane-aligned widths: XLU rotates + iota edge masks (no unaligned
        # lane-slice relayouts, no pad buffer).
        lane = jax.lax.broadcasted_iota(jnp.int32, (1,) * (x.ndim - 1) + (w,),
                                        x.ndim - 1)
        out = x
        for d in range(1, p + 1):
            lo = jnp.where(lane >= d, pltpu.roll(x, d, axis=x.ndim - 1), _NEG)
            hi = jnp.where(lane < w - d, pltpu.roll(x, -d, axis=x.ndim - 1), _NEG)
            out = jnp.maximum(out, jnp.maximum(lo, hi))
        return out
    # Narrow / unaligned W: small -inf pad + static slices.
    # TODO(synk): for genuinely narrow images, fold sublane rows into lanes
    # (view (rows, W) as (rows/8, 8W)) to recover lane occupancy.
    pad = jnp.full(x.shape[:-1] + (p,), _NEG, dtype=x.dtype)
    xp = jnp.concatenate([pad, x, pad], axis=-1)
    out = x
    for d in range(1, p + 1):
        lo = xp[..., p - d:p - d + w]
        hi = xp[..., p + d:p + d + w]
        out = jnp.maximum(out, jnp.maximum(lo, hi))
    return out


def _maxpool_rows(x, k, lo, size):
    """Stride-1 size-k max pool along axis 1 (sublanes), evaluated only for
    output rows [lo, lo+size).  Requires lo >= (k-1)//2 and
    lo + size + (k-1)//2 <= x.shape[1]; the >= 8-row halo guarantees this, so
    no -inf pad / concatenate is needed along H."""
    p = (k - 1) // 2
    out = x[:, lo:lo + size, :]
    for d in range(1, p + 1):
        out = jnp.maximum(out, x[:, lo - d:lo - d + size, :])
        out = jnp.maximum(out, x[:, lo + d:lo + d + size, :])
    return out


# --------------------------------------------------------------------------
# kernel: one (batch, H-tile) step
# --------------------------------------------------------------------------
def _boundary_kernel(pred_ref, ptop_ref, pbot_ref, gt_ref, gtop_ref, gbot_ref,
                     out_ref, *, theta0, theta, h_total, tile_h, hb, n_classes,
                     ragged):
    t = pl.program_id(1)
    row0 = t * tile_h                       # global row of first interior row
    hw_win = tile_h + 2 * hb
    p0 = (theta0 - 1) // 2
    p1 = (theta - 1) // 2

    # Window assembly: (top halo | tile | bottom halo).  Softmax / one-hot are
    # per-pixel, so computing them on the window matches the untiled result.
    logits = jnp.concatenate([ptop_ref[...], pred_ref[...], pbot_ref[...]], axis=1)
    labels = jnp.concatenate([gtop_ref[...], gt_ref[...], gbot_ref[...]], axis=0)

    omp = _one_minus_softmax(logits)                 # (C, Hw, W)  1 - softmax
    omg = _one_minus_onehot(labels, n_classes)       # (C, Hw, W)  1 - one_hot

    # Rows outside [0, H) behave like torch.max_pool2d's -inf padding.
    row_idx = jax.lax.broadcasted_iota(jnp.int32, (1, hw_win, 1), 1)
    grow = row0 - hb + row_idx                       # pretend global row index
    in_img = jnp.logical_and(grow >= 0, grow < h_total)

    omp = jnp.where(in_img, omp, _NEG)
    omg = jnp.where(in_img, omg, _NEG)

    # ---- theta0 boundary maps on rows [hb-p1, hb+tile_h+p1) only -----------
    lo0 = hb - p1
    size0 = tile_h + 2 * p1
    omp_w = _maxpool_w(omp, theta0)                  # lane pool, full window
    omg_w = _maxpool_w(omg, theta0)
    pred_b = _maxpool_rows(omp_w, theta0, lo0, size0) - omp[:, lo0:lo0 + size0, :]
    gt_b = _maxpool_rows(omg_w, theta0, lo0, size0) - omg[:, lo0:lo0 + size0, :]

    # Out-of-image rows must again act as -inf inputs to the theta pool.
    in_img0 = in_img[:, lo0:lo0 + size0, :]
    pred_b = jnp.where(in_img0, pred_b, _NEG)
    gt_b = jnp.where(in_img0, gt_b, _NEG)

    # ---- theta extended boundary maps, interior rows only ------------------
    pred_bw = _maxpool_w(pred_b, theta)
    gt_bw = _maxpool_w(gt_b, theta)
    pred_b_ext = _maxpool_rows(pred_bw, theta, p1, tile_h)   # (C, tile_h, W)
    gt_b_ext = _maxpool_rows(gt_bw, theta, p1, tile_h)

    # Interior slices instead of full-window mask multiplies.
    pred_b_i = pred_b[:, p1:p1 + tile_h, :]
    gt_b_i = gt_b[:, p1:p1 + tile_h, :]

    if ragged:
        # Only the last ragged tile has interior rows beyond H; zero them.
        keep = (grow[:, hb:hb + tile_h, :] < h_total).astype(jnp.float32)
        pred_b_i = pred_b_i * keep
        gt_b_i = gt_b_i * keep

    # Reduce H (sublanes) per channel, pack, then one XLU lane reduce and a
    # single lane-dense (1, 4C) store per grid step.
    s1 = jnp.sum(pred_b_i * gt_b_ext, axis=1)        # (C, W)
    s2 = jnp.sum(pred_b_i, axis=1)
    s3 = jnp.sum(pred_b_ext * gt_b_i, axis=1)
    s4 = jnp.sum(gt_b_i, axis=1)
    stacked = jnp.concatenate([s1, s2, s3, s4], axis=0)          # (4C, W)
    out_ref[...] = jnp.sum(stacked, axis=-1).reshape(1, 4 * n_classes)


# --------------------------------------------------------------------------
# wrapper
# --------------------------------------------------------------------------
def _vmem_budgets():
    """(vmem_limit_bytes, temp_budget_bytes) derived from the chip generation."""
    cap = 64 * 1024 * 1024                       # conservative fallback (v7x-like)
    try:
        info = pltpu.get_tpu_info()
        cap = int(getattr(info, "vmem_capacity_bytes", cap)) or cap
    except Exception:
        pass
    vmem_limit = max(32 << 20, min(int(cap * 0.85), cap - (8 << 20)))
    temp_budget = max(8 << 20, int(cap * 0.44))
    return vmem_limit, temp_budget


def _pick_tile_h(h, c, w, hb, in_itemsize, temp_budget):
    """Rows per tile so the live in-kernel window temporaries fit the budget.

    ~12 live f32 (C, rows, W) window-sized buffers at peak (softmax / one-hot
    maps, the four boundary maps, lane-pool temporaries) plus the
    double-buffered logits and label input streams.
    """
    per_row = (12 * 4 + 2 * in_itemsize) * c * w + 2 * 4 * w
    th = temp_budget // max(per_row, 1) - 2 * hb
    th = (int(th) // hb) * hb
    return max(hb, min(th, 2048))


def boundary_loss(pred, gt, theta0=3, theta=5, tile_h=None):
    """pred: (N, C, H, W) float logits, gt: (N, H, W) integer labels."""
    n, c, h, w = pred.shape
    if not jnp.issubdtype(pred.dtype, jnp.floating):
        pred = pred.astype(jnp.float32)
    gt = gt.astype(jnp.int32)

    p0 = (theta0 - 1) // 2
    p1 = (theta - 1) // 2
    q = p0 + p1                                     # combined pool radius
    hb = 8 * pl.cdiv(max(q, 1), 8)                  # sublane-aligned halo rows
    if h < hb:
        # TODO(synk): images with H < the 8-row halo block would need the old
        # padded single-window variant; not needed for segmentation-sized inputs.
        raise ValueError(f"boundary_loss kernel requires H >= {hb}, got H={h}")

    vmem_limit, temp_budget = _vmem_budgets()

    if tile_h is None:
        tile_h = _pick_tile_h(h, c, w, hb, pred.dtype.itemsize, temp_budget)
    tile_h = max(hb, (int(tile_h) // hb) * hb)      # multiple of the halo block
    if tile_h >= h:
        tile_h = h                                  # single H tile
    # Keep at least two grid steps so a dual-TensorCore chip (v7x) can shard
    # the "parallel" grid across both cores; harmless (one extra step) on 1-TC.
    if n * pl.cdiv(h, tile_h) < 2 and h >= 2 * hb:
        tile_h = max(hb, ((h // 2) // hb) * hb)

    n_ht = pl.cdiv(h, tile_h)
    thb = max(tile_h // hb, 1)                      # main tile in halo blocks
    n_hb = pl.cdiv(h, hb)
    ragged = (h % tile_h) != 0

    kernel = functools.partial(
        _boundary_kernel, theta0=theta0, theta=theta, h_total=h,
        tile_h=tile_h, hb=hb, n_classes=c, ragged=ragged)

    def top_map(b, t):
        return (b, 0, jnp.maximum(t * thb - 1, 0), 0)

    def bot_map(b, t):
        return (b, 0, jnp.minimum((t + 1) * thb, n_hb - 1), 0)

    def gtop_map(b, t):
        return (b, jnp.maximum(t * thb - 1, 0), 0)

    def gbot_map(b, t):
        return (b, jnp.minimum((t + 1) * thb, n_hb - 1), 0)

    partial_sums = pl.pallas_call(
        kernel,
        out_shape=jax.ShapeDtypeStruct((n, n_ht, 1, 4 * c), jnp.float32),
        grid=(n, n_ht),
        in_specs=[
            pl.BlockSpec((None, c, tile_h, w), lambda b, t: (b, 0, t, 0)),
            pl.BlockSpec((None, c, hb, w), top_map),
            pl.BlockSpec((None, c, hb, w), bot_map),
            pl.BlockSpec((None, tile_h, w), lambda b, t: (b, t, 0)),
            pl.BlockSpec((None, hb, w), gtop_map),
            pl.BlockSpec((None, hb, w), gbot_map),
        ],
        out_specs=pl.BlockSpec((None, None, 1, 4 * c), lambda b, t: (b, t, 0, 0)),
        compiler_params=pltpu.CompilerParams(
            dimension_semantics=("parallel", "parallel"),
            vmem_limit_bytes=vmem_limit,
        ),
    )(pred, pred, pred, gt, gt, gt)

    # tiny (N, 4, C) epilogue — plain JAX glue
    sums = jnp.sum(partial_sums[:, :, 0, :], axis=1).reshape(n, 4, c)
    s_pb_gte, s_pb, s_pbe_gb, s_gb = (sums[:, 0], sums[:, 1], sums[:, 2], sums[:, 3])

    P = s_pb_gte / (s_pb + 1e-7)
    R = s_pbe_gb / (s_gb + 1e-7)
    BF1 = 2.0 * P * R / (P + R + 1e-7)
    return jnp.mean(1.0 - BF1[:, 1:])


if __name__ == "__main__":
    key = jax.random.PRNGKey(0)
    k_pred, k_gt = jax.random.split(key)

    N, C, H, W = 2, 4, 16, 16
    pred = jax.random.normal(k_pred, (N, C, H, W), dtype=jnp.float32)
    gt = jax.random.randint(k_gt, (N, H, W), 0, C, dtype=jnp.int32)

    # tile_h=8 forces two H tiles so the halo / tiling path is exercised even
    # at this toy 16x16 size.
    loss = boundary_loss(pred, gt, theta0=3, theta=5, tile_h=8)
    jax.block_until_ready(loss)
    print("KERNEL_OK")
</pallas_src>

<mosaic_0001>
module attributes {stable_mosaic.version = 11 : i64} {
  func.func @_boundary_kernel(%arg0: i32, %arg1: i32, %arg2: memref<1x4x8x16xf32, #tpu.memory_space<vmem>>, %arg3: memref<1x4x8x16xf32, #tpu.memory_space<vmem>>, %arg4: memref<1x4x8x16xf32, #tpu.memory_space<vmem>>, %arg5: memref<1x8x16xi32, #tpu.memory_space<vmem>>, %arg6: memref<1x8x16xi32, #tpu.memory_space<vmem>>, %arg7: memref<1x8x16xi32, #tpu.memory_space<vmem>>, %arg8: memref<1x1x1x16xf32, #tpu.memory_space<vmem>>) attributes {dimension_semantics = [#tpu.dimension_semantics<parallel>, #tpu.dimension_semantics<parallel>], iteration_bounds = array<i64: 2, 2>, scalar_prefetch = 0 : i64, scratch_operands = 0 : i64, tpu.core_type = #tpu.core_type<tc>, window_params = [{transform_indices = @transform_0, window_bounds = array<i64: 1, 4, 8, 16>}, {transform_indices = @transform_1, window_bounds = array<i64: 1, 4, 8, 16>}, {transform_indices = @transform_2, window_bounds = array<i64: 1, 4, 8, 16>}, {transform_indices = @transform_3, window_bounds = array<i64: 1, 8, 16>}, {transform_indices = @transform_4, window_bounds = array<i64: 1, 8, 16>}, {transform_indices = @transform_5, window_bounds = array<i64: 1, 8, 16>}, {transform_indices = @transform_6, window_bounds = array<i64: 1, 1, 1, 16>}]} {
    %c8_i32 = arith.constant 8 : i32
    %0 = arith.muli %arg1, %c8_i32 : i32
    %c0 = arith.constant 0 : index
    %c0_0 = arith.constant 0 : index
    %c0_1 = arith.constant 0 : index
    %c0_2 = arith.constant 0 : index
    %1 = vector.load %arg3[%c0, %c0_0, %c0_1, %c0_2] : memref<1x4x8x16xf32, #tpu.memory_space<vmem>>, vector<1x4x8x16xf32>
    %2 = vector.shape_cast %1 : vector<1x4x8x16xf32> to vector<4x8x16xf32>
    %c0_3 = arith.constant 0 : index
    %c0_4 = arith.constant 0 : index
    %c0_5 = arith.constant 0 : index
    %c0_6 = arith.constant 0 : index
    %3 = vector.load %arg2[%c0_3, %c0_4, %c0_5, %c0_6] : memref<1x4x8x16xf32, #tpu.memory_space<vmem>>, vector<1x4x8x16xf32>
    %4 = vector.shape_cast %3 : vector<1x4x8x16xf32> to vector<4x8x16xf32>
    %c0_7 = arith.constant 0 : index
    %c0_8 = arith.constant 0 : index
    %c0_9 = arith.constant 0 : index
    %c0_10 = arith.constant 0 : index
    %5 = vector.load %arg4[%c0_7, %c0_8, %c0_9, %c0_10] : memref<1x4x8x16xf32, #tpu.memory_space<vmem>>, vector<1x4x8x16xf32>
    %6 = vector.shape_cast %5 : vector<1x4x8x16xf32> to vector<4x8x16xf32>
    %7 = tpu.concatenate %2, %4, %6 in 1 : vector<4x8x16xf32>, vector<4x8x16xf32>, vector<4x8x16xf32> -> vector<4x24x16xf32>
    %c0_11 = arith.constant 0 : index
    %c0_12 = arith.constant 0 : index
    %c0_13 = arith.constant 0 : index
    %8 = vector.load %arg6[%c0_11, %c0_12, %c0_13] : memref<1x8x16xi32, #tpu.memory_space<vmem>>, vector<1x8x16xi32>
    %9 = vector.shape_cast %8 : vector<1x8x16xi32> to vector<8x16xi32>
    %c0_14 = arith.constant 0 : index
    %c0_15 = arith.constant 0 : index
    %c0_16 = arith.constant 0 : index
    %10 = vector.load %arg5[%c0_14, %c0_15, %c0_16] : memref<1x8x16xi32, #tpu.memory_space<vmem>>, vector<1x8x16xi32>
    %11 = vector.shape_cast %10 : vector<1x8x16xi32> to vector<8x16xi32>
    %c0_17 = arith.constant 0 : index
    %c0_18 = arith.constant 0 : index
    %c0_19 = arith.constant 0 : index
    %12 = vector.load %arg7[%c0_17, %c0_18, %c0_19] : memref<1x8x16xi32, #tpu.memory_space<vmem>>, vector<1x8x16xi32>
    %13 = vector.shape_cast %12 : vector<1x8x16xi32> to vector<8x16xi32>
    %14 = tpu.concatenate %9, %11, %13 in 0 : vector<8x16xi32>, vector<8x16xi32>, vector<8x16xi32> -> vector<24x16xi32>
    %cst = arith.constant dense<0xFF800000> : vector<24x16xf32>
    %15 = vector.multi_reduction <maximumf>, %7, %cst [0] : vector<4x24x16xf32> to vector<24x16xf32>
    %16 = vector.shape_cast %15 : vector<24x16xf32> to vector<1x24x16xf32>
    %17 = vector.broadcast %16 : vector<1x24x16xf32> to vector<4x24x16xf32>
    %18 = arith.subf %7, %17 : vector<4x24x16xf32>
    %19 = math.exp %18 : vector<4x24x16xf32>
    %cst_20 = arith.constant dense<0.000000e+00> : vector<24x16xf32>
    %20 = vector.multi_reduction <add>, %19, %cst_20 [0] : vector<4x24x16xf32> to vector<24x16xf32>
    %21 = vector.shape_cast %20 : vector<24x16xf32> to vector<1x24x16xf32>
    %22 = tpu.reciprocal %21 {approx = true} : vector<1x24x16xf32> -> vector<1x24x16xf32>
    %23 = vector.broadcast %22 : vector<1x24x16xf32> to vector<4x24x16xf32>
    %24 = arith.mulf %19, %23 : vector<4x24x16xf32>
    %cst_21 = arith.constant 1.000000e+00 : f32
    %25 = vector.broadcast %cst_21 : f32 to vector<4x24x16xf32>
    %26 = arith.subf %25, %24 : vector<4x24x16xf32>
    %27 = tpu.iota {dimensions = array<i32: 0>} : vector<4x1x1xi32>
    %28 = vector.shape_cast %14 : vector<24x16xi32> to vector<1x24x16xi32>
    %29 = vector.broadcast %27 : vector<4x1x1xi32> to vector<4x24x16xi32>
    %30 = vector.broadcast %28 : vector<1x24x16xi32> to vector<4x24x16xi32>
    %31 = arith.cmpi eq, %29, %30 : vector<4x24x16xi32>
    %cst_22 = arith.constant 0.000000e+00 : f32
    %cst_23 = arith.constant 1.000000e+00 : f32
    %32 = vector.broadcast %cst_22 : f32 to vector<4x24x16xf32>
    %33 = vector.broadcast %cst_23 : f32 to vector<4x24x16xf32>
    %34 = arith.select %31, %32, %33 : vector<4x24x16xi1>, vector<4x24x16xf32>
    %35 = tpu.iota {dimensions = array<i32: 1>} : vector<1x24x1xi32>
    %c8_i32_24 = arith.constant 8 : i32
    %36 = arith.subi %0, %c8_i32_24 : i32
    %37 = vector.broadcast %36 : i32 to vector<1x24x1xi32>
    %38 = arith.addi %37, %35 : vector<1x24x1xi32>
    %c0_i32 = arith.constant 0 : i32
    %39 = vector.broadcast %c0_i32 : i32 to vector<1x24x1xi32>
    %40 = arith.cmpi sge, %38, %39 : vector<1x24x1xi32>
    %c16_i32 = arith.constant 16 : i32
    %41 = vector.broadcast %c16_i32 : i32 to vector<1x24x1xi32>
    %42 = arith.cmpi slt, %38, %41 : vector<1x24x1xi32>
    %43 = arith.andi %40, %42 : vector<1x24x1xi1>
    %cst_25 = arith.constant -1.000000e+30 : f32
    %44 = vector.shape_cast %43 : vector<1x24x1xi1> to vector<1x24x1xi1>
    %45 = vector.broadcast %44 : vector<1x24x1xi1> to vector<4x24x16xi1>
    %46 = vector.broadcast %cst_25 : f32 to vector<4x24x16xf32>
    %47 = arith.select %45, %26, %46 : vector<4x24x16xi1>, vector<4x24x16xf32>
    %cst_26 = arith.constant -1.000000e+30 : f32
    %48 = vector.shape_cast %43 : vector<1x24x1xi1> to vector<1x24x1xi1>
    %49 = vector.broadcast %48 : vector<1x24x1xi1> to vector<4x24x16xi1>
    %50 = vector.broadcast %cst_26 : f32 to vector<4x24x16xf32>
    %51 = arith.select %49, %34, %50 : vector<4x24x16xi1>, vector<4x24x16xf32>
    %cst_27 = arith.constant -1.000000e+30 : f32
    %52 = vector.broadcast %cst_27 : f32 to vector<4x24x1xf32>
    %53 = tpu.concatenate %52, %47, %52 in 2 : vector<4x24x1xf32>, vector<4x24x16xf32>, vector<4x24x1xf32> -> vector<4x24x18xf32>
    %54 = vector.extract_strided_slice %53 {offsets = [0, 0, 0], sizes = [4, 24, 16], strides = [1, 1, 1]} : vector<4x24x18xf32> to vector<4x24x16xf32>
    %55 = vector.extract_strided_slice %53 {offsets = [0, 0, 2], sizes = [4, 24, 16], strides = [1, 1, 1]} : vector<4x24x18xf32> to vector<4x24x16xf32>
    %56 = arith.maximumf %54, %55 : vector<4x24x16xf32>
    %57 = arith.maximumf %47, %56 : vector<4x24x16xf32>
    %cst_28 = arith.constant -1.000000e+30 : f32
    %58 = vector.broadcast %cst_28 : f32 to vector<4x24x1xf32>
    %59 = tpu.concatenate %58, %51, %58 in 2 : vector<4x24x1xf32>, vector<4x24x16xf32>, vector<4x24x1xf32> -> vector<4x24x18xf32>
    %60 = vector.extract_strided_slice %59 {offsets = [0, 0, 0], sizes = [4, 24, 16], strides = [1, 1, 1]} : vector<4x24x18xf32> to vector<4x24x16xf32>
    %61 = vector.extract_strided_slice %59 {offsets = [0, 0, 2], sizes = [4, 24, 16], strides = [1, 1, 1]} : vector<4x24x18xf32> to vector<4x24x16xf32>
    %62 = arith.maximumf %60, %61 : vector<4x24x16xf32>
    %63 = arith.maximumf %51, %62 : vector<4x24x16xf32>
    %64 = vector.extract_strided_slice %57 {offsets = [0, 6, 0], sizes = [4, 12, 16], strides = [1, 1, 1]} : vector<4x24x16xf32> to vector<4x12x16xf32>
    %65 = vector.extract_strided_slice %57 {offsets = [0, 5, 0], sizes = [4, 12, 16], strides = [1, 1, 1]} : vector<4x24x16xf32> to vector<4x12x16xf32>
    %66 = arith.maximumf %64, %65 : vector<4x12x16xf32>
    %67 = vector.extract_strided_slice %57 {offsets = [0, 7, 0], sizes = [4, 12, 16], strides = [1, 1, 1]} : vector<4x24x16xf32> to vector<4x12x16xf32>
    %68 = arith.maximumf %66, %67 : vector<4x12x16xf32>
    %69 = vector.extract_strided_slice %47 {offsets = [0, 6, 0], sizes = [4, 12, 16], strides = [1, 1, 1]} : vector<4x24x16xf32> to vector<4x12x16xf32>
    %70 = arith.subf %68, %69 : vector<4x12x16xf32>
    %71 = vector.extract_strided_slice %63 {offsets = [0, 6, 0], sizes = [4, 12, 16], strides = [1, 1, 1]} : vector<4x24x16xf32> to vector<4x12x16xf32>
    %72 = vector.extract_strided_slice %63 {offsets = [0, 5, 0], sizes = [4, 12, 16], strides = [1, 1, 1]} : vector<4x24x16xf32> to vector<4x12x16xf32>
    %73 = arith.maximumf %71, %72 : vector<4x12x16xf32>
    %74 = vector.extract_strided_slice %63 {offsets = [0, 7, 0], sizes = [4, 12, 16], strides = [1, 1, 1]} : vector<4x24x16xf32> to vector<4x12x16xf32>
    %75 = arith.maximumf %73, %74 : vector<4x12x16xf32>
    %76 = vector.extract_strided_slice %51 {offsets = [0, 6, 0], sizes = [4, 12, 16], strides = [1, 1, 1]} : vector<4x24x16xf32> to vector<4x12x16xf32>
    %77 = arith.subf %75, %76 : vector<4x12x16xf32>
    %78 = vector.extract_strided_slice %43 {offsets = [0, 6, 0], sizes = [1, 12, 1], strides = [1, 1, 1]} : vector<1x24x1xi1> to vector<1x12x1xi1>
    %cst_29 = arith.constant -1.000000e+30 : f32
    %79 = vector.shape_cast %78 : vector<1x12x1xi1> to vector<1x12x1xi1>
    %80 = vector.broadcast %79 : vector<1x12x1xi1> to vector<4x12x16xi1>
    %81 = vector.broadcast %cst_29 : f32 to vector<4x12x16xf32>
    %82 = arith.select %80, %70, %81 : vector<4x12x16xi1>, vector<4x12x16xf32>
    %cst_30 = arith.constant -1.000000e+30 : f32
    %83 = vector.shape_cast %78 : vector<1x12x1xi1> to vector<1x12x1xi1>
    %84 = vector.broadcast %83 : vector<1x12x1xi1> to vector<4x12x16xi1>
    %85 = vector.broadcast %cst_30 : f32 to vector<4x12x16xf32>
    %86 = arith.select %84, %77, %85 : vector<4x12x16xi1>, vector<4x12x16xf32>
    %cst_31 = arith.constant -1.000000e+30 : f32
    %87 = vector.broadcast %cst_31 : f32 to vector<4x12x2xf32>
    %88 = tpu.concatenate %87, %82, %87 in 2 : vector<4x12x2xf32>, vector<4x12x16xf32>, vector<4x12x2xf32> -> vector<4x12x20xf32>
    %89 = vector.extract_strided_slice %88 {offsets = [0, 0, 1], sizes = [4, 12, 16], strides = [1, 1, 1]} : vector<4x12x20xf32> to vector<4x12x16xf32>
    %90 = vector.extract_strided_slice %88 {offsets = [0, 0, 3], sizes = [4, 12, 16], strides = [1, 1, 1]} : vector<4x12x20xf32> to vector<4x12x16xf32>
    %91 = arith.maximumf %89, %90 : vector<4x12x16xf32>
    %92 = arith.maximumf %82, %91 : vector<4x12x16xf32>
    %93 = vector.extract_strided_slice %88 {offsets = [0, 0, 0], sizes = [4, 12, 16], strides = [1, 1, 1]} : vector<4x12x20xf32> to vector<4x12x16xf32>
    %94 = vector.extract_strided_slice %88 {offsets = [0, 0, 4], sizes = [4, 12, 16], strides = [1, 1, 1]} : vector<4x12x20xf32> to vector<4x12x16xf32>
    %95 = arith.maximumf %93, %94 : vector<4x12x16xf32>
    %96 = arith.maximumf %92, %95 : vector<4x12x16xf32>
    %cst_32 = arith.constant -1.000000e+30 : f32
    %97 = vector.broadcast %cst_32 : f32 to vector<4x12x2xf32>
    %98 = tpu.concatenate %97, %86, %97 in 2 : vector<4x12x2xf32>, vector<4x12x16xf32>, vector<4x12x2xf32> -> vector<4x12x20xf32>
    %99 = vector.extract_strided_slice %98 {offsets = [0, 0, 1], sizes = [4, 12, 16], strides = [1, 1, 1]} : vector<4x12x20xf32> to vector<4x12x16xf32>
    %100 = vector.extract_strided_slice %98 {offsets = [0, 0, 3], sizes = [4, 12, 16], strides = [1, 1, 1]} : vector<4x12x20xf32> to vector<4x12x16xf32>
    %101 = arith.maximumf %99, %100 : vector<4x12x16xf32>
    %102 = arith.maximumf %86, %101 : vector<4x12x16xf32>
    %103 = vector.extract_strided_slice %98 {offsets = [0, 0, 0], sizes = [4, 12, 16], strides = [1, 1, 1]} : vector<4x12x20xf32> to vector<4x12x16xf32>
    %104 = vector.extract_strided_slice %98 {offsets = [0, 0, 4], sizes = [4, 12, 16], strides = [1, 1, 1]} : vector<4x12x20xf32> to vector<4x12x16xf32>
    %105 = arith.maximumf %103, %104 : vector<4x12x16xf32>
    %106 = arith.maximumf %102, %105 : vector<4x12x16xf32>
    %107 = vector.extract_strided_slice %96 {offsets = [0, 2, 0], sizes = [4, 8, 16], strides = [1, 1, 1]} : vector<4x12x16xf32> to vector<4x8x16xf32>
    %108 = vector.extract_strided_slice %96 {offsets = [0, 1, 0], sizes = [4, 8, 16], strides = [1, 1, 1]} : vector<4x12x16xf32> to vector<4x8x16xf32>
    %109 = arith.maximumf %107, %108 : vector<4x8x16xf32>
    %110 = vector.extract_strided_slice %96 {offsets = [0, 3, 0], sizes = [4, 8, 16], strides = [1, 1, 1]} : vector<4x12x16xf32> to vector<4x8x16xf32>
    %111 = arith.maximumf %109, %110 : vector<4x8x16xf32>
    %112 = vector.extract_strided_slice %96 {offsets = [0, 0, 0], sizes = [4, 8, 16], strides = [1, 1, 1]} : vector<4x12x16xf32> to vector<4x8x16xf32>
    %113 = arith.maximumf %111, %112 : vector<4x8x16xf32>
    %114 = vector.extract_strided_slice %96 {offsets = [0, 4, 0], sizes = [4, 8, 16], strides = [1, 1, 1]} : vector<4x12x16xf32> to vector<4x8x16xf32>
    %115 = arith.maximumf %113, %114 : vector<4x8x16xf32>
    %116 = vector.extract_strided_slice %106 {offsets = [0, 2, 0], sizes = [4, 8, 16], strides = [1, 1, 1]} : vector<4x12x16xf32> to vector<4x8x16xf32>
    %117 = vector.extract_strided_slice %106 {offsets = [0, 1, 0], sizes = [4, 8, 16], strides = [1, 1, 1]} : vector<4x12x16xf32> to vector<4x8x16xf32>
    %118 = arith.maximumf %116, %117 : vector<4x8x16xf32>
    %119 = vector.extract_strided_slice %106 {offsets = [0, 3, 0], sizes = [4, 8, 16], strides = [1, 1, 1]} : vector<4x12x16xf32> to vector<4x8x16xf32>
    %120 = arith.maximumf %118, %119 : vector<4x8x16xf32>
    %121 = vector.extract_strided_slice %106 {offsets = [0, 0, 0], sizes = [4, 8, 16], strides = [1, 1, 1]} : vector<4x12x16xf32> to vector<4x8x16xf32>
    %122 = arith.maximumf %120, %121 : vector<4x8x16xf32>
    %123 = vector.extract_strided_slice %106 {offsets = [0, 4, 0], sizes = [4, 8, 16], strides = [1, 1, 1]} : vector<4x12x16xf32> to vector<4x8x16xf32>
    %124 = arith.maximumf %122, %123 : vector<4x8x16xf32>
    %125 = vector.extract_strided_slice %82 {offsets = [0, 2, 0], sizes = [4, 8, 16], strides = [1, 1, 1]} : vector<4x12x16xf32> to vector<4x8x16xf32>
    %126 = vector.extract_strided_slice %86 {offsets = [0, 2, 0], sizes = [4, 8, 16], strides = [1, 1, 1]} : vector<4x12x16xf32> to vector<4x8x16xf32>
    %127 = arith.mulf %125, %124 : vector<4x8x16xf32>
    %cst_33 = arith.constant dense<0.000000e+00> : vector<4x16xf32>
    %128 = vector.multi_reduction <add>, %127, %cst_33 [1] : vector<4x8x16xf32> to vector<4x16xf32>
    %cst_34 = arith.constant dense<0.000000e+00> : vector<4x16xf32>
    %129 = vector.multi_reduction <add>, %125, %cst_34 [1] : vector<4x8x16xf32> to vector<4x16xf32>
    %130 = arith.mulf %115, %126 : vector<4x8x16xf32>
    %cst_35 = arith.constant dense<0.000000e+00> : vector<4x16xf32>
    %131 = vector.multi_reduction <add>, %130, %cst_35 [1] : vector<4x8x16xf32> to vector<4x16xf32>
    %cst_36 = arith.constant dense<0.000000e+00> : vector<4x16xf32>
    %132 = vector.multi_reduction <add>, %126, %cst_36 [1] : vector<4x8x16xf32> to vector<4x16xf32>
    %133 = tpu.concatenate %128, %129, %131, %132 in 0 : vector<4x16xf32>, vector<4x16xf32>, vector<4x16xf32>, vector<4x16xf32> -> vector<16x16xf32>
    %cst_37 = arith.constant dense<0.000000e+00> : vector<16xf32>
    %134 = vector.multi_reduction <add>, %133, %cst_37 [1] : vector<16x16xf32> to vector<16xf32>
    %135 = vector.shape_cast %134 : vector<16xf32> to vector<1x16xf32>
    %c0_38 = arith.constant 0 : index
    %c0_39 = arith.constant 0 : index
    %c0_40 = arith.constant 0 : index
    %c0_41 = arith.constant 0 : index
    %136 = vector.load %arg8[%c0_38, %c0_39, %c0_40, %c0_41] : memref<1x1x1x16xf32, #tpu.memory_space<vmem>>, vector<1x1x1x16xf32>
    %137 = vector.shape_cast %136 : vector<1x1x1x16xf32> to vector<1x16xf32>
    %138 = vector.shape_cast %135 : vector<1x16xf32> to vector<1x1x1x16xf32>
    tpu.vector_store %arg8[%c0_38, %c0_39, %c0_40, %c0_41], %138 {strides = array<i32>} : memref<1x1x1x16xf32, #tpu.memory_space<vmem>>, vector<1x1x1x16xf32>,
    return
  }
  func.func @transform_0(%arg0: i32, %arg1: i32) -> (i32, i32, i32, i32) {
    %c0_i32 = arith.constant 0 : i32
    %c0_i32_0 = arith.constant 0 : i32
    %c0_i32_1 = arith.constant 0 : i32
    return %arg0, %c0_i32, %arg1, %c0_i32_0 : i32, i32, i32, i32
  }
  func.func @transform_1(%arg0: i32, %arg1: i32) -> (i32, i32, i32, i32) {
    %c1_i32 = arith.constant 1 : i32
    %0 = arith.muli %arg1, %c1_i32 : i32
    %c1_i32_0 = arith.constant 1 : i32
    %1 = arith.subi %0, %c1_i32_0 : i32
    %c0_i32 = arith.constant 0 : i32
    %2 = arith.maxsi %1, %c0_i32 : i32
    %c0_i32_1 = arith.constant 0 : i32
    %c0_i32_2 = arith.constant 0 : i32
    %c0_i32_3 = arith.constant 0 : i32
    return %arg0, %c0_i32_1, %2, %c0_i32_2 : i32, i32, i32, i32
  }
  func.func @transform_2(%arg0: i32, %arg1: i32) -> (i32, i32, i32, i32) {
    %c1_i32 = arith.constant 1 : i32
    %0 = arith.addi %arg1, %c1_i32 : i32
    %c1_i32_0 = arith.constant 1 : i32
    %1 = arith.muli %0, %c1_i32_0 : i32
    %c1_i32_1 = arith.constant 1 : i32
    %2 = arith.minsi %1, %c1_i32_1 : i32
    %c0_i32 = arith.constant 0 : i32
    %c0_i32_2 = arith.constant 0 : i32
    %c0_i32_3 = arith.constant 0 : i32
    return %arg0, %c0_i32, %2, %c0_i32_2 : i32, i32, i32, i32
  }
  func.func @transform_3(%arg0: i32, %arg1: i32) -> (i32, i32, i32) {
    %c0_i32 = arith.constant 0 : i32
    %c0_i32_0 = arith.constant 0 : i32
    return %arg0, %arg1, %c0_i32 : i32, i32, i32
  }
  func.func @transform_4(%arg0: i32, %arg1: i32) -> (i32, i32, i32) {
    %c1_i32 = arith.constant 1 : i32
    %0 = arith.muli %arg1, %c1_i32 : i32
    %c1_i32_0 = arith.constant 1 : i32
    %1 = arith.subi %0, %c1_i32_0 : i32
    %c0_i32 = arith.constant 0 : i32
    %2 = arith.maxsi %1, %c0_i32 : i32
    %c0_i32_1 = arith.constant 0 : i32
    %c0_i32_2 = arith.constant 0 : i32
    return %arg0, %2, %c0_i32_1 : i32, i32, i32
  }
  func.func @transform_5(%arg0: i32, %arg1: i32) -> (i32, i32, i32) {
    %c1_i32 = arith.constant 1 : i32
    %0 = arith.addi %arg1, %c1_i32 : i32
    %c1_i32_0 = arith.constant 1 : i32
    %1 = arith.muli %0, %c1_i32_0 : i32
    %c1_i32_1 = arith.constant 1 : i32
    %2 = arith.minsi %1, %c1_i32_1 : i32
    %c0_i32 = arith.constant 0 : i32
    %c0_i32_2 = arith.constant 0 : i32
    return %arg0, %2, %c0_i32 : i32, i32, i32
  }
  func.func @transform_6(%arg0: i32, %arg1: i32) -> (i32, i32, i32, i32) {
    %c0_i32 = arith.constant 0 : i32
    %c0_i32_0 = arith.constant 0 : i32
    %c0_i32_1 = arith.constant 0 : i32
    return %arg0, %arg1, %c0_i32, %c0_i32_0 : i32, i32, i32, i32
  }
}

</mosaic_0001>

<llo_original>
// kernel: tpu_custom_call.1
$region0: #{tpu_custom_call.1}
  #allocation0 [shape = 'u32[]', space=smem, size = 0x4, offset = 0x4, fixed_abs, tag = 'smem constant byte address 0x4 - core index']
  #allocation1 [shape = 'u32[144,128]{1,0:T(1,128)}', space=vmem, size = 0x12000, scoped, tag = 'internal scratch']
  %s0 = inlined_call_operand.hbm [shape: f32[2,4,16,16], index: 0, kind: input, shape index: {}]
  %s1 = inlined_call_operand.hbm [shape: f32[2,4,16,16], index: 1, kind: input, shape index: {}]
  %s2 = inlined_call_operand.hbm [shape: f32[2,4,16,16], index: 2, kind: input, shape index: {}]
  %s3 = inlined_call_operand.hbm [shape: s32[2,16,16], index: 3, kind: input, shape index: {}]
  %s4 = inlined_call_operand.hbm [shape: s32[2,16,16], index: 4, kind: input, shape index: {}]
  %s5 = inlined_call_operand.hbm [shape: s32[2,16,16], index: 5, kind: input, shape index: {}]
  %s6 = inlined_call_operand.hbm [shape: f32[2,2,1,16], index: 6, kind: output, shape index: {}]
  %s7 = sld [smem:[#allocation0]]
  $region81: #{tpu_custom_call.1} parent=0
    _
  %s9 = ssub.s32 1, %s7
  %s10 = scalar_select 0, %s9, %s7
  $region1: #{tpu_custom_call.1} parent=0
    #allocation2 [shape = 'u8[32768]{0}', space=vmem, size = 0x8000, scoped, tag = 'input window, operand 0']
    #allocation3 [shape = 's32[2]{0}', space=sflag, size = 0x8, scoped, tag = 'scoped memory for tpu_custom_call.1']
    #allocation4 [shape = 's32[2]{0}', space=sflag, size = 0x8, scoped, tag = 'scoped memory for tpu_custom_call.1']
    #allocation5 [shape = 'u8[32768]{0}', space=vmem, size = 0x8000, scoped, tag = 'input window, operand 1']
    #allocation6 [shape = 's32[2]{0}', space=sflag, size = 0x8, scoped, tag = 'scoped memory for tpu_custom_call.1']
    #allocation7 [shape = 'u8[32768]{0}', space=vmem, size = 0x8000, scoped, tag = 'input window, operand 2']
    #allocation8 [shape = 'u8[8192]{0}', space=vmem, size = 0x2000, scoped, tag = 'input window, operand 3']
    #allocation9 [shape = 's32[2]{0}', space=sflag, size = 0x8, scoped, tag = 'scoped memory for tpu_custom_call.1']
    #allocation10 [shape = 'u8[8192]{0}', space=vmem, size = 0x2000, scoped, tag = 'input window, operand 4']
    #allocation11 [shape = 'u8[8192]{0}', space=vmem, size = 0x2000, scoped, tag = 'input window, operand 5']
    #allocation12 [shape = 's32[2]{0}', space=sflag, size = 0x8, scoped, tag = 'scoped memory for tpu_custom_call.1']
    #allocation13 [shape = 'u8[1024]{0}', space=vmem, size = 0x400, scoped, tag = 'output window, operand 0']
    %11 = vsyncpa [#allocation3], 0
    %s12 = scalar_lea.sflag [#allocation3], 1
    %13 = vsyncpa %s12, 0
    %14 = vsyncpa [#allocation6], 0
    %s15 = scalar_lea.sflag [#allocation6], 1
    %16 = vsyncpa %s15, 0
    %17 = vsyncpa [#allocation9], 0
    %s18 = scalar_lea.sflag [#allocation9], 1
    %19 = vsyncpa %s18, 0
    %20 = vsyncpa [#allocation12], 0
    %s21 = scalar_lea.sflag [#allocation12], 1
    %22 = vsyncpa %s21, 0
    %23 = vsyncpa [#allocation4], 0
    %s24 = scalar_lea.sflag [#allocation4], 1
    %25 = vsyncpa %s24, 0
    loop: start=0, step=1, limit=6
    $region2: #{tpu_custom_call.1} parent=1 // loop_pre_header
      _
    $region3: #{tpu_custom_call.1} parent=1 // loop_header
      %s27 = sphi 0, %s31
      %p28 = scmp.ge.s32.totalorder %s27, 6
      %s34 = sphi 0, %s46
      %s35 = sphi 0, %s42
      %s36 = sphi 0, %s34
      %s37 = sphi 0, %s35
      %s38 = sphi 0, %s36
      %s39 = sphi 0, %s37
      %s51 = sphi 0, %s53
      %s54 = sphi 0, %s51
      %s55 = sphi 0, %s54
      %s71 = sphi 0, %s55
      %s85 = sphi 0, %s87
      %s88 = sphi 0, %s85
      %s89 = sphi 0, %s88
      %s105 = sphi 0, %s89
      %s119 = sphi 0, %s121
      %s122 = sphi 0, %s119
      %s123 = sphi 0, %s122
      %s139 = sphi 0, %s123
      %s147 = sphi 0, %s149
      %s150 = sphi 0, %s147
      %s151 = sphi 0, %s150
      %s167 = sphi 0, %s151
      %s181 = sphi 0, %s183
      %s184 = sphi 0, %s181
      %s185 = sphi 0, %s184
      %s201 = sphi 0, %s185
      %s215 = sphi 0, %s217
      %s218 = sphi 0, %s215
      %s219 = sphi 0, %s218
      %s235 = sphi 0, %s219
      %s243 = sphi 0, %s245
      %s246 = sphi 0, %s243
      %s247 = sphi 0, %s246
      %s263 = sphi 0, %s247
    $region4: #{tpu_custom_call.1} parent=1 // loop_header_branch
      %30 = sbr.rel (%p28) target = $region8
    $region5: #{tpu_custom_call.1} parent=1 // loop_body
      %s32 = ssub.s32 %s27, 1
      %s33 = ssub.s32 %s27, 2
      %s40 = sadd.s32 1, %s35
      %p41 = scmp.ge.s32.totalorder %s40, 2
      %s42 = scalar_select %p41, 0, %s40
      %s43 = sadd.s32 1, %s34
      %s44 = scalar_select %p41, %s43, %s34
      %p45 = scmp.ge.s32.totalorder %s44, 2
      %s46 = scalar_select %p45, 0, %s44
      %s47 = ssub.s32 %s34, %s46
      %s48 = ssub.s32 %s35, %s42
      %s49 = sor.u32 %s47, %s48
      %p50 = scmp.eq.s32.totalorder %s49, 0
      %s52 = sadd.s32 %s51, 1
      %s53 = scalar_select %p50, %s51, %s52
      %p56 = pneg %p50
      %p57 = scmp.eq.s32.totalorder %s27, 3
      %p58 = por %p56, %p57
      %p59 = scmp.ne.s32.totalorder %s51, %s54
      %p60 = scmp.eq.s32.totalorder %s27, 0
      %p61 = por %p59, %p60
      %p62 = scmp.ne.s32.totalorder %s51, %s54
      %p63 = scmp.eq.s32.totalorder %s32, 3
      %p64 = por %p62, %p63
      %p65 = scmp.ne.s32.totalorder %s54, %s55
      %p66 = scmp.eq.s32.totalorder %s32, 0
      %p67 = por %p65, %p66
      %p68 = scmp.ne.s32.totalorder %s54, %s55
      %p69 = scmp.eq.s32.totalorder %s33, 3
      %p70 = por %p68, %p69
      %p72 = scmp.ne.s32.totalorder %s55, %s71
      %p73 = scmp.eq.s32.totalorder %s33, 0
      %p74 = por %p72, %p73
      %s75 = ssub.s32 %s35, 1
      %p76 = scmp.gt.s32.totalorder %s75, 0
      %s77 = scalar_select %p76, %s75, 0
      %s78 = ssub.s32 %s42, 1
      %p79 = scmp.gt.s32.totalorder %s78, 0
      %s80 = scalar_select %p79, %s78, 0
      %s81 = ssub.s32 %s34, %s46
      %s82 = ssub.s32 %s77, %s80
      %s83 = sor.u32 %s81, %s82
      %p84 = scmp.eq.s32.totalorder %s83, 0
      %s86 = sadd.s32 %s85, 1
      %s87 = scalar_select %p84, %s85, %s86
      %p90 = pneg %p84
      %p91 = scmp.eq.s32.totalorder %s27, 3
      %p92 = por %p90, %p91
      %p93 = scmp.ne.s32.totalorder %s85, %s88
      %p94 = scmp.eq.s32.totalorder %s27, 0
      %p95 = por %p93, %p94
      %p96 = scmp.ne.s32.totalorder %s85, %s88
      %p97 = scmp.eq.s32.totalorder %s32, 3
      %p98 = por %p96, %p97
      %p99 = scmp.ne.s32.totalorder %s88, %s89
      %p100 = scmp.eq.s32.totalorder %s32, 0
      %p101 = por %p99, %p100
      %p102 = scmp.ne.s32.totalorder %s88, %s89
      %p103 = scmp.eq.s32.totalorder %s33, 3
      %p104 = por %p102, %p103
      %p106 = scmp.ne.s32.totalorder %s89, %s105
      %p107 = scmp.eq.s32.totalorder %s33, 0
      %p108 = por %p106, %p107
      %s109 = sadd.s32 %s35, 1
      %p110 = scmp.lt.s32.totalorder %s109, 1
      %s111 = scalar_select %p110, %s109, 1
      %s112 = sadd.s32 %s42, 1
      %p113 = scmp.lt.s32.totalorder %s112, 1
      %s114 = scalar_select %p113, %s112, 1
      %s115 = ssub.s32 %s34, %s46
      %s116 = ssub.s32 %s111, %s114
      %s117 = sor.u32 %s115, %s116
      %p118 = scmp.eq.s32.totalorder %s117, 0
      %s120 = sadd.s32 %s119, 1
      %s121 = scalar_select %p118, %s119, %s120
      %p124 = pneg %p118
      %p125 = scmp.eq.s32.totalorder %s27, 3
      %p126 = por %p124, %p125
      %p127 = scmp.ne.s32.totalorder %s119, %s122
      %p128 = scmp.eq.s32.totalorder %s27, 0
      %p129 = por %p127, %p128
      %p130 = scmp.ne.s32.totalorder %s119, %s122
      %p131 = scmp.eq.s32.totalorder %s32, 3
      %p132 = por %p130, %p131
      %p133 = scmp.ne.s32.totalorder %s122, %s123
      %p134 = scmp.eq.s32.totalorder %s32, 0
      %p135 = por %p133, %p134
      %p136 = scmp.ne.s32.totalorder %s122, %s123
      %p137 = scmp.eq.s32.totalorder %s33, 3
      %p138 = por %p136, %p137
      %p140 = scmp.ne.s32.totalorder %s123, %s139
      %p141 = scmp.eq.s32.totalorder %s33, 0
      %p142 = por %p140, %p141
      %s143 = ssub.s32 %s34, %s46
      %s144 = ssub.s32 %s35, %s42
      %s145 = sor.u32 %s143, %s144
      %p146 = scmp.eq.s32.totalorder %s145, 0
      %s148 = sadd.s32 %s147, 1
      %s149 = scalar_select %p146, %s147, %s148
      %p152 = pneg %p146
      %p153 = scmp.eq.s32.totalorder %s27, 3
      %p154 = por %p152, %p153
      %p155 = scmp.ne.s32.totalorder %s147, %s150
      %p156 = scmp.eq.s32.totalorder %s27, 0
      %p157 = por %p155, %p156
      %p158 = scmp.ne.s32.totalorder %s147, %s150
      %p159 = scmp.eq.s32.totalorder %s32, 3
      %p160 = por %p158, %p159
      %p161 = scmp.ne.s32.totalorder %s150, %s151
      %p162 = scmp.eq.s32.totalorder %s32, 0
      %p163 = por %p161, %p162
      %p164 = scmp.ne.s32.totalorder %s150, %s151
      %p165 = scmp.eq.s32.totalorder %s33, 3
      %p166 = por %p164, %p165
      %p168 = scmp.ne.s32.totalorder %s151, %s167
      %p169 = scmp.eq.s32.totalorder %s33, 0
      %p170 = por %p168, %p169
      %s171 = ssub.s32 %s35, 1
      %p172 = scmp.gt.s32.totalorder %s171, 0
      %s173 = scalar_select %p172, %s171, 0
      %s174 = ssub.s32 %s42, 1
      %p175 = scmp.gt.s32.totalorder %s174, 0
      %s176 = scalar_select %p175, %s174, 0
      %s177 = ssub.s32 %s34, %s46
      %s178 = ssub.s32 %s173, %s176
      %s179 = sor.u32 %s177, %s178
      %p180 = scmp.eq.s32.totalorder %s179, 0
      %s182 = sadd.s32 %s181, 1
      %s183 = scalar_select %p180, %s181, %s182
      %p186 = pneg %p180
      %p187 = scmp.eq.s32.totalorder %s27, 3
      %p188 = por %p186, %p187
      %p189 = scmp.ne.s32.totalorder %s181, %s184
      %p190 = scmp.eq.s32.totalorder %s27, 0
      %p191 = por %p189, %p190
      %p192 = scmp.ne.s32.totalorder %s181, %s184
      %p193 = scmp.eq.s32.totalorder %s32, 3
      %p194 = por %p192, %p193
      %p195 = scmp.ne.s32.totalorder %s184, %s185
      %p196 = scmp.eq.s32.totalorder %s32, 0
      %p197 = por %p195, %p196
      %p198 = scmp.ne.s32.totalorder %s184, %s185
      %p199 = scmp.eq.s32.totalorder %s33, 3
      %p200 = por %p198, %p199
      %p202 = scmp.ne.s32.totalorder %s185, %s201
      %p203 = scmp.eq.s32.totalorder %s33, 0
      %p204 = por %p202, %p203
      %s205 = sadd.s32 %s35, 1
      %p206 = scmp.lt.s32.totalorder %s205, 1
      %s207 = scalar_select %p206, %s205, 1
      %s208 = sadd.s32 %s42, 1
      %p209 = scmp.lt.s32.totalorder %s208, 1
      %s210 = scalar_select %p209, %s208, 1
      %s211 = ssub.s32 %s34, %s46
      %s212 = ssub.s32 %s207, %s210
      %s213 = sor.u32 %s211, %s212
      %p214 = scmp.eq.s32.totalorder %s213, 0
      %s216 = sadd.s32 %s215, 1
      %s217 = scalar_select %p214, %s215, %s216
      %p220 = pneg %p214
      %p221 = scmp.eq.s32.totalorder %s27, 3
      %p222 = por %p220, %p221
      %p223 = scmp.ne.s32.totalorder %s215, %s218
      %p224 = scmp.eq.s32.totalorder %s27, 0
      %p225 = por %p223, %p224
      %p226 = scmp.ne.s32.totalorder %s215, %s218
      %p227 = scmp.eq.s32.totalorder %s32, 3
      %p228 = por %p226, %p227
      %p229 = scmp.ne.s32.totalorder %s218, %s219
      %p230 = scmp.eq.s32.totalorder %s32, 0
      %p231 = por %p229, %p230
      %p232 = scmp.ne.s32.totalorder %s218, %s219
      %p233 = scmp.eq.s32.totalorder %s33, 3
      %p234 = por %p232, %p233
      %p236 = scmp.ne.s32.totalorder %s219, %s235
      %p237 = scmp.eq.s32.totalorder %s33, 0
      %p238 = por %p236, %p237
      %s239 = ssub.s32 %s34, %s46
      %s240 = ssub.s32 %s35, %s42
      %s241 = sor.u32 %s239, %s240
      %p242 = scmp.eq.s32.totalorder %s241, 0
      %s244 = sadd.s32 %s243, 1
      %s245 = scalar_select %p242, %s243, %s244
      %p248 = pneg %p242
      %p249 = scmp.eq.s32.totalorder %s27, 3
      %p250 = por %p248, %p249
      %p251 = scmp.ne.s32.totalorder %s243, %s246
      %p252 = scmp.eq.s32.totalorder %s27, 0
      %p253 = por %p251, %p252
      %p254 = scmp.ne.s32.totalorder %s243, %s246
      %p255 = scmp.eq.s32.totalorder %s32, 3
      %p256 = por %p254, %p255
      %p257 = scmp.ne.s32.totalorder %s246, %s247
      %p258 = scmp.eq.s32.totalorder %s32, 0
      %p259 = por %p257, %p258
      %p260 = scmp.ne.s32.totalorder %s246, %s247
      %p261 = scmp.eq.s32.totalorder %s33, 3
      %p262 = por %p260, %p261
      %p264 = scmp.ne.s32.totalorder %s247, %s263
      %p265 = scmp.eq.s32.totalorder %s33, 0
      %p266 = por %p264, %p265
      %p267 = scmp.le.s32.totalorder 1, %s27
      %p268 = scmp.lt.s32.totalorder %s27, 5
      %p269 = pnand %p267, %p268
      %p270 = pneg %p269
      // Predicated region
      $region9: #{tpu_custom_call.1} parent=5 // pred_check
        _
      $region10: #{tpu_custom_call.1} parent=5 // pred_check_branch
        %272 = sbr.rel (%p269) target = $region12
      $region11: #{tpu_custom_call.1} parent=5 // pred_region
        %s273 = ssub.s32 %s27, 1
      $region12: #{tpu_custom_call.1} parent=5 // pred_fallthru
        _
      %p274 = scmp.lt.s32.totalorder %s27, 4
      // Predicated region
      $region13: #{tpu_custom_call.1} parent=5 // pred_check
        %p275 = pneg %p274
      $region14: #{tpu_custom_call.1} parent=5 // pred_check_branch
        %277 = sbr.rel (%p275) target = $region16
      $region15: #{tpu_custom_call.1} parent=5 // pred_region
        // Predicated region
        $region17: #{tpu_custom_call.1} parent=15 // pred_check
          %p278 = pneg %p61
        $region18: #{tpu_custom_call.1} parent=15 // pred_check_branch
          %280 = sbr.rel (%p278) target = $region20
        $region19: #{tpu_custom_call.1} parent=15 // pred_region
          %s281 = sand.u32 %s51, 1
          %s282 = scalar_lea.sflag [#allocation3], %s281
          %s283 = sand.u32 %s51, 1
          %s284 = smul.addr %s283, 32
          %s285 = scalar_lea.vmem [#allocation2], %s284
          %s287 = ssub.s32 512, 512
          %288 = vsyncadd %s282, %s287
          %s289 = smul.addr %s34, 8
          %s290 = sadd.s32 %s35, %s289
          %s291 = smul.addr %s290, 128
          %s292 = scalar_lea.hbm %s0, %s291
          %s293 = sshll.u32 %s285, 4
          %s294 = int_to_ptr.vmem [resolvable:$true] %s293
          %299 = dma.hbm_to_vmem [thread:$0]  %s292, 512, %s294, %s282, 256, 128, 8
        $region20: #{tpu_custom_call.1} parent=15 // pred_fallthru
          _
        // Predicated region
        $region21: #{tpu_custom_call.1} parent=15 // pred_check
          %p300 = pneg %p95
        $region22: #{tpu_custom_call.1} parent=15 // pred_check_branch
          %302 = sbr.rel (%p300) target = $region24
        $region23: #{tpu_custom_call.1} parent=15 // pred_region
          %s303 = sand.u32 %s27, 1
          %s304 = scalar_lea.sflag [#allocation6], %s303
          %s305 = sand.u32 %s85, 1
          %s306 = smul.addr %s305, 32
          %s307 = scalar_lea.vmem [#allocation5], %s306
          %s308 = ssub.s32 %s35, 1
          %p309 = scmp.gt.s32.totalorder %s308, 0
          %s310 = scalar_select %p309, %s308, 0
          %s312 = ssub.s32 512, 512
          %313 = vsyncadd %s304, %s312
          %s314 = smul.addr %s34, 8
          %s315 = sadd.s32 %s310, %s314
          %s316 = smul.addr %s315, 128
          %s317 = scalar_lea.hbm %s1, %s316
          %s318 = sshll.u32 %s307, 4
          %s319 = int_to_ptr.vmem [resolvable:$true] %s318
          %324 = dma.hbm_to_vmem [thread:$0]  %s317, 512, %s319, %s304, 256, 128, 8
        $region24: #{tpu_custom_call.1} parent=15 // pred_fallthru
          _
        // Predicated region
        $region25: #{tpu_custom_call.1} parent=15 // pred_check
          %p325 = pneg %p129
        $region26: #{tpu_custom_call.1} parent=15 // pred_check_branch
          %327 = sbr.rel (%p325) target = $region28
        $region27: #{tpu_custom_call.1} parent=15 // pred_region
          %s328 = sand.u32 %s27, 1
          %s329 = scalar_lea.sflag [#allocation6], %s328
          %s330 = sand.u32 %s119, 1
          %s331 = smul.addr %s330, 32
          %s332 = scalar_lea.vmem [#allocation7], %s331
          %s333 = sadd.s32 %s35, 1
          %p334 = scmp.lt.s32.totalorder %s333, 1
          %s335 = scalar_select %p334, %s333, 1
          %s337 = ssub.s32 512, 512
          %338 = vsyncadd %s329, %s337
          %s339 = smul.addr %s34, 8
          %s340 = sadd.s32 %s335, %s339
          %s341 = smul.addr %s340, 128
          %s342 = scalar_lea.hbm %s2, %s341
          %s343 = sshll.u32 %s332, 4
          %s344 = int_to_ptr.vmem [resolvable:$true] %s343
          %349 = dma.hbm_to_vmem [thread:$0]  %s342, 512, %s344, %s329, 256, 128, 8
        $region28: #{tpu_custom_call.1} parent=15 // pred_fallthru
          _
        // Predicated region
        $region29: #{tpu_custom_call.1} parent=15 // pred_check
          %p350 = pneg %p157
        $region30: #{tpu_custom_call.1} parent=15 // pred_check_branch
          %352 = sbr.rel (%p350) target = $region32
        $region31: #{tpu_custom_call.1} parent=15 // pred_region
          %s353 = sand.u32 %s27, 1
          %s354 = scalar_lea.sflag [#allocation9], %s353
          %s355 = sand.u32 %s147, 1
          %s356 = smul.addr %s355, 8
          %s357 = scalar_lea.vmem [#allocation8], %s356
          %s359 = ssub.s32 128, 128
          %360 = vsyncadd %s354, %s359
          %s361 = smul.addr %s34, 2
          %s362 = sadd.s32 %s35, %s361
          %s363 = smul.addr %s362, 128
          %s364 = scalar_lea.hbm %s3, %s363
          %s366 = sshll.u32 %s357, 4
          %s367 = int_to_ptr.vmem [resolvable:$true] %s366
          %369 = dma.hbm_to_vmem [thread:$0]  %s364, 128, %s367, %s354
        $region32: #{tpu_custom_call.1} parent=15 // pred_fallthru
          _
        // Predicated region
        $region33: #{tpu_custom_call.1} parent=15 // pred_check
          %p370 = pneg %p191
        $region34: #{tpu_custom_call.1} parent=15 // pred_check_branch
          %372 = sbr.rel (%p370) target = $region36
        $region35: #{tpu_custom_call.1} parent=15 // pred_region
          %s373 = sand.u32 %s27, 1
          %s374 = scalar_lea.sflag [#allocation9], %s373
          %s375 = sand.u32 %s181, 1
          %s376 = smul.addr %s375, 8
          %s377 = scalar_lea.vmem [#allocation10], %s376
          %s378 = ssub.s32 %s35, 1
          %p379 = scmp.gt.s32.totalorder %s378, 0
          %s380 = scalar_select %p379, %s378, 0
          %s382 = ssub.s32 128, 128
          %383 = vsyncadd %s374, %s382
          %s384 = smul.addr %s34, 2
          %s385 = sadd.s32 %s380, %s384
          %s386 = smul.addr %s385, 128
          %s387 = scalar_lea.hbm %s4, %s386
          %s389 = sshll.u32 %s377, 4
          %s390 = int_to_ptr.vmem [resolvable:$true] %s389
          %392 = dma.hbm_to_vmem [thread:$0]  %s387, 128, %s390, %s374
        $region36: #{tpu_custom_call.1} parent=15 // pred_fallthru
          _
        // Predicated region
        $region37: #{tpu_custom_call.1} parent=15 // pred_check
          %p393 = pneg %p225
        $region38: #{tpu_custom_call.1} parent=15 // pred_check_branch
          %395 = sbr.rel (%p393) target = $region40
        $region39: #{tpu_custom_call.1} parent=15 // pred_region
          %s396 = sand.u32 %s215, 1
          %s397 = scalar_lea.sflag [#allocation12], %s396
          %s398 = sand.u32 %s215, 1
          %s399 = smul.addr %s398, 8
          %s400 = scalar_lea.vmem [#allocation11], %s399
          %s401 = sadd.s32 %s35, 1
          %p402 = scmp.lt.s32.totalorder %s401, 1
          %s403 = scalar_select %p402, %s401, 1
          %s405 = ssub.s32 128, 128
          %406 = vsyncadd %s397, %s405
          %s407 = smul.addr %s34, 2
          %s408 = sadd.s32 %s403, %s407
          %s409 = smul.addr %s408, 128
          %s410 = scalar_lea.hbm %s5, %s409
          %s412 = sshll.u32 %s400, 4
          %s413 = int_to_ptr.vmem [resolvable:$true] %s412
          %415 = dma.hbm_to_vmem [thread:$0]  %s410, 128, %s413, %s397
        $region40: #{tpu_custom_call.1} parent=15 // pred_fallthru
          _
      $region16: #{tpu_custom_call.1} parent=5 // pred_fallthru
        _
      %p416 = scmp.le.s32.totalorder 1, %s27
      %p417 = scmp.lt.s32.totalorder %s27, 5
      %p418 = pnand %p416, %p417
      %p419 = pneg %p418
      // Predicated region
      $region41: #{tpu_custom_call.1} parent=5 // pred_check
        _
      $region42: #{tpu_custom_call.1} parent=5 // pred_check_branch
        %421 = sbr.rel (%p418) target = $region44
      $region43: #{tpu_custom_call.1} parent=5 // pred_region
        %s422 = ssub.s32 %s27, 1
        %s423 = sand.u32 %s54, 1
        %s424 = scalar_lea.sflag [#allocation3], %s423
        %s425 = sand.u32 %s54, 1
        %s426 = smul.addr %s425, 32
        %s427 = scalar_lea.vmem [#allocation2], %s426
        // Predicated region
        $region45: #{tpu_custom_call.1} parent=43 // pred_check
          %p428 = pneg %p67
        $region46: #{tpu_custom_call.1} parent=43 // pred_check_branch
          %430 = sbr.rel (%p428) target = $region48
        $region47: #{tpu_custom_call.1} parent=43 // pred_region
          %431 = dma.done %s424, 512
        $region48: #{tpu_custom_call.1} parent=43 // pred_fallthru
          _
        %s432 = sand.u32 %s32, 1
        %s433 = scalar_lea.sflag [#allocation6], %s432
        %s434 = sand.u32 %s88, 1
        %s435 = smul.addr %s434, 32
        %s436 = scalar_lea.vmem [#allocation5], %s435
        // Predicated region
        $region49: #{tpu_custom_call.1} parent=43 // pred_check
          %p437 = pneg %p101
        $region50: #{tpu_custom_call.1} parent=43 // pred_check_branch
          %439 = sbr.rel (%p437) target = $region52
        $region51: #{tpu_custom_call.1} parent=43 // pred_region
          %440 = dma.done %s433, 512
        $region52: #{tpu_custom_call.1} parent=43 // pred_fallthru
          _
        %s441 = sand.u32 %s32, 1
        %s442 = scalar_lea.sflag [#allocation6], %s441
        %s443 = sand.u32 %s122, 1
        %s444 = smul.addr %s443, 32
        %s445 = scalar_lea.vmem [#allocation7], %s444
        // Predicated region
        $region53: #{tpu_custom_call.1} parent=43 // pred_check
          %p446 = pneg %p135
        $region54: #{tpu_custom_call.1} parent=43 // pred_check_branch
          %448 = sbr.rel (%p446) target = $region56
        $region55: #{tpu_custom_call.1} parent=43 // pred_region
          %449 = dma.done %s442, 512
        $region56: #{tpu_custom_call.1} parent=43 // pred_fallthru
          _
        %s450 = sand.u32 %s32, 1
        %s451 = scalar_lea.sflag [#allocation9], %s450
        %s452 = sand.u32 %s150, 1
        %s453 = smul.addr %s452, 8
        %s454 = scalar_lea.vmem [#allocation8], %s453
        // Predicated region
        $region57: #{tpu_custom_call.1} parent=43 // pred_check
          %p455 = pneg %p163
        $region58: #{tpu_custom_call.1} parent=43 // pred_check_branch
          %457 = sbr.rel (%p455) target = $region60
        $region59: #{tpu_custom_call.1} parent=43 // pred_region
          %458 = dma.done %s451, 128
        $region60: #{tpu_custom_call.1} parent=43 // pred_fallthru
          _
        %s459 = sand.u32 %s32, 1
        %s460 = scalar_lea.sflag [#allocation9], %s459
        %s461 = sand.u32 %s184, 1
        %s462 = smul.addr %s461, 8
        %s463 = scalar_lea.vmem [#allocation10], %s462
        // Predicated region
        $region61: #{tpu_custom_call.1} parent=43 // pred_check
          %p464 = pneg %p197
        $region62: #{tpu_custom_call.1} parent=43 // pred_check_branch
          %466 = sbr.rel (%p464) target = $region64
        $region63: #{tpu_custom_call.1} parent=43 // pred_region
          %467 = dma.done %s460, 128
        $region64: #{tpu_custom_call.1} parent=43 // pred_fallthru
          _
        %s468 = sand.u32 %s218, 1
        %s469 = scalar_lea.sflag [#allocation12], %s468
        %s470 = sand.u32 %s218, 1
        %s471 = smul.addr %s470, 8
        %s472 = scalar_lea.vmem [#allocation11], %s471
        // Predicated region
        $region65: #{tpu_custom_call.1} parent=43 // pred_check
          %p473 = pneg %p231
        $region66: #{tpu_custom_call.1} parent=43 // pred_check_branch
          %475 = sbr.rel (%p473) target = $region68
        $region67: #{tpu_custom_call.1} parent=43 // pred_region
          %476 = dma.done %s469, 128
        $region68: #{tpu_custom_call.1} parent=43 // pred_fallthru
          _
        %s477 = sand.u32 %s54, 1
        %s478 = scalar_lea.sflag [#allocation3], %s477
        %s479 = sand.u32 %s54, 1
        %s480 = smul.addr %s479, 32
        %s481 = scalar_lea.vmem [#allocation2], %s480
        %p482 = pneg %p67
        %p483 = pneg %p64
        %s484 = sand.u32 %s32, 1
        %s485 = scalar_lea.sflag [#allocation6], %s484
        %s486 = sand.u32 %s88, 1
        %s487 = smul.addr %s486, 32
        %s488 = scalar_lea.vmem [#allocation5], %s487
        %p489 = pneg %p101
        %p490 = pneg %p98
        %s491 = sand.u32 %s32, 1
        %s492 = scalar_lea.sflag [#allocation6], %s491
        %s493 = sand.u32 %s122, 1
        %s494 = smul.addr %s493, 32
        %s495 = scalar_lea.vmem [#allocation7], %s494
        %p496 = pneg %p135
        %p497 = pneg %p132
        %s498 = sand.u32 %s32, 1
        %s499 = scalar_lea.sflag [#allocation9], %s498
        %s500 = sand.u32 %s150, 1
        %s501 = smul.addr %s500, 8
        %s502 = scalar_lea.vmem [#allocation8], %s501
        %p503 = pneg %p163
        %p504 = pneg %p160
        %s505 = sand.u32 %s32, 1
        %s506 = scalar_lea.sflag [#allocation9], %s505
        %s507 = sand.u32 %s184, 1
        %s508 = smul.addr %s507, 8
        %s509 = scalar_lea.vmem [#allocation10], %s508
        %p510 = pneg %p197
        %p511 = pneg %p194
        %s512 = sand.u32 %s218, 1
        %s513 = scalar_lea.sflag [#allocation12], %s512
        %s514 = sand.u32 %s218, 1
        %s515 = smul.addr %s514, 8
        %s516 = scalar_lea.vmem [#allocation11], %s515
        %p517 = pneg %p231
        %p518 = pneg %p228
        %p519 = pneg %p259
        %p520 = pneg %p256
        %s521 = sand.u32 %s246, 1
        %s522 = scalar_lea.sflag [#allocation4], %s521
        %s523 = sand.u32 %s246, 1
        %s524 = scalar_lea.vmem [#allocation13], %s523
        %s525 = ssub.s32 %s37, 1
        %p526 = scmp.gt.s32.totalorder %s525, 0
        %s527 = scalar_select %p526, %s525, 0
        %s528 = sadd.s32 %s37, 1
        %p529 = scmp.lt.s32.totalorder %s528, 1
        %s530 = scalar_select %p529, %s528, 1
        %s531 = ssub.s32 %s37, 1
        %p532 = scmp.gt.s32.totalorder %s531, 0
        %s533 = scalar_select %p532, %s531, 0
        %s534 = sadd.s32 %s37, 1
        %p535 = scmp.lt.s32.totalorder %s534, 1
        %s536 = scalar_select %p535, %s534, 1
        %s537 = smul.u32 %s37, 8
        %v538 = vld [vmem:[%s436] sm:$0xff]
        %v539 = vld [vmem:[%s436 + $0x8] sm:$0xff]
        %v540 = vld [vmem:[%s436 + $0x10] sm:$0xff]
        %v541 = vld [vmem:[%s436 + $0x18] sm:$0xff]
        %v542 = vld [vmem:[%s427] sm:$0xff]
        %v543 = vld [vmem:[%s427 + $0x8] sm:$0xff]
        %v544 = vld [vmem:[%s427 + $0x10] sm:$0xff]
        %v545 = vld [vmem:[%s427 + $0x18] sm:$0xff]
        %v546 = vld [vmem:[%s445] sm:$0xff]
        %v547 = vld [vmem:[%s445 + $0x8] sm:$0xff]
        %v548 = vld [vmem:[%s445 + $0x10] sm:$0xff]
        %v549 = vld [vmem:[%s445 + $0x18] sm:$0xff]
        %v550 = vld [vmem:[%s463] sm:$0xff]
        %v551 = vld [vmem:[%s454] sm:$0xff]
        %v552 = vld [vmem:[%s472] sm:$0xff]
        %vm553 = vcmask 130048
        %v554 = vsel %vm553, %v538, -inf
        %v555 = vsel %vm553, %v539, -inf
        %v556 = vsel %vm553, %v540, -inf
        %v557 = vmax.f32 %v554, %v556
        %v558 = vsel %vm553, %v541, -inf
        %v559 = vmax.f32 %v555, %v558
        %v560 = vmax.f32 %v557, %v559
        %v561 = vsel %vm553, %v542, -inf
        %v562 = vsel %vm553, %v543, -inf
        %v563 = vsel %vm553, %v544, -inf
        %v564 = vmax.f32 %v561, %v563
        %v565 = vsel %vm553, %v545, -inf
        %v566 = vmax.f32 %v562, %v565
        %v567 = vmax.f32 %v564, %v566
        %v568 = vsel %vm553, %v546, -inf
        %v569 = vsel %vm553, %v547, -inf
        %v570 = vsel %vm553, %v548, -inf
        %v571 = vmax.f32 %v568, %v570
        %v572 = vsel %vm553, %v549, -inf
        %v573 = vmax.f32 %v569, %v572
        %v574 = vmax.f32 %v571, %v573
        %v575 = vsub.f32 %v538, %v560
        %v576 = vsub.f32 %v542, %v567
        %v577 = vsub.f32 %v546, %v574
        %v578 = vsub.f32 %v539, %v560
        %v579 = vsub.f32 %v543, %v567
        %v580 = vsub.f32 %v547, %v574
        %v581 = vsub.f32 %v540, %v560
        %v582 = vsub.f32 %v544, %v567
        %v583 = vsub.f32 %v548, %v574
        %v584 = vsub.f32 %v541, %v560
        %v585 = vsub.f32 %v545, %v567
        %v586 = vsub.f32 %v549, %v574
        %v587 = vmul.f32 %v575, 1.442695
        %v588 = vpow.pop %v587
        %v589 = vmul.f32 %v576, 1.442695
        %v590 = vpow.pop %v589
        %v591 = vmul.f32 %v577, 1.442695
        %v592 = vpow.pop %v591
        %v593 = vmul.f32 %v578, 1.442695
        %v594 = vpow.pop %v593
        %v595 = vmul.f32 %v579, 1.442695
        %v596 = vpow.pop %v595
        %v597 = vmul.f32 %v580, 1.442695
        %v598 = vpow.pop %v597
        %v599 = vmul.f32 %v581, 1.442695
        %v600 = vpow.pop %v599
        %v601 = vmul.f32 %v582, 1.442695
        %v602 = vpow.pop %v601
        %v603 = vmul.f32 %v583, 1.442695
        %v604 = vpow.pop %v603
        %v605 = vmul.f32 %v584, 1.442695
        %v606 = vpow.pop %v605
        %v607 = vmul.f32 %v585, 1.442695
        %v608 = vpow.pop %v607
        %v609 = vmul.f32 %v586, 1.442695
        %v610 = vpow.pop %v609
        %v611 = vsel %vm553, %v588, 0.0
        %v612 = vsel %vm553, %v594, 0.0
        %v613 = vadd.f32 %v611, %v612
        %v614 = vsel %vm553, %v600, 0.0
        %v615 = vadd.f32 %v613, %v614
        %v616 = vsel %vm553, %v606, 0.0
        %v617 = vadd.f32 %v615, %v616
        %v618 = vsel %vm553, %v590, 0.0
        %v619 = vsel %vm553, %v596, 0.0
        %v620 = vadd.f32 %v618, %v619
        %v621 = vsel %vm553, %v602, 0.0
        %v622 = vadd.f32 %v620, %v621
        %v623 = vsel %vm553, %v608, 0.0
        %v624 = vadd.f32 %v622, %v623
        %v625 = vsel %vm553, %v592, 0.0
        %v626 = vsel %vm553, %v598, 0.0
        %v627 = vadd.f32 %v625, %v626
        %v628 = vsel %vm553, %v604, 0.0
        %v629 = vadd.f32 %v627, %v628
        %v630 = vsel %vm553, %v610, 0.0
        %v631 = vadd.f32 %v629, %v630
        %v632 = vrcp.pop %v617
        %v633 = vrcp.pop %v624
        %v634 = vrcp.pop %v631
        %v635 = vmul.f32 %v588, %v632
        %v636 = vmul.f32 %v590, %v633
        %v637 = vmul.f32 %v592, %v634
        %v638 = vmul.f32 %v594, %v632
        %v639 = vmul.f32 %v596, %v633
        %v640 = vmul.f32 %v598, %v634
        %v641 = vmul.f32 %v600, %v632
        %v642 = vmul.f32 %v602, %v633
        %v643 = vmul.f32 %v604, %v634
        %v644 = vmul.f32 %v606, %v632
        %v645 = vmul.f32 %v608, %v633
        %v646 = vmul.f32 %v610, %v634
        %v647 = vsub.f32 1.0, %v635
        %v648 = vsub.f32 1.0, %v636
        %v649 = vsub.f32 1.0, %v637
        %v650 = vsub.f32 1.0, %v638
        %v651 = vsub.f32 1.0, %v639
        %v652 = vsub.f32 1.0, %v640
        %v653 = vsub.f32 1.0, %v641
        %v654 = vsub.f32 1.0, %v642
        %v655 = vsub.f32 1.0, %v643
        %v656 = vsub.f32 1.0, %v644
        %v657 = vsub.f32 1.0, %v645
        %v658 = vsub.f32 1.0, %v646
        %vm659 = vcmp.eq.s32.totalorder %v550, 0
        %vm660 = vcmp.eq.s32.totalorder %v551, 0
        %vm661 = vcmp.eq.s32.totalorder %v552, 0
        %vm662 = vcmp.eq.s32.totalorder %v550, 1
        %vm663 = vcmp.eq.s32.totalorder %v551, 1
        %vm664 = vcmp.eq.s32.totalorder %v552, 1
        %vm665 = vcmp.eq.s32.totalorder %v550, 2
        %vm666 = vcmp.eq.s32.totalorder %v551, 2
        %vm667 = vcmp.eq.s32.totalorder %v552, 2
        %vm668 = vcmp.eq.s32.totalorder %v550, 3
        %vm669 = vcmp.eq.s32.totalorder %v551, 3
        %vm670 = vcmp.eq.s32.totalorder %v552, 3
        %v671 = vsel %vm659, 0.0, 1.0
        %v672 = vsel %vm660, 0.0, 1.0
        %v673 = vsel %vm661, 0.0, 1.0
        %v674 = vsel %vm662, 0.0, 1.0
        %v675 = vsel %vm663, 0.0, 1.0
        %v676 = vsel %vm664, 0.0, 1.0
        %v677 = vsel %vm665, 0.0, 1.0
        %v678 = vsel %vm666, 0.0, 1.0
        %v679 = vsel %vm667, 0.0, 1.0
        %v680 = vsel %vm668, 0.0, 1.0
        %v681 = vsel %vm669, 0.0, 1.0
        %v682 = vsel %vm670, 0.0, 1.0
        %v683 = vlaneseq
        %v684 = vshrl.u32 %v683, 7
        %v685 = vadd.s32 %v684, 8
        %v686 = vadd.s32 %v684, 16
        %s687 = ssub.s32 %s537, 8
        %v688 = vstv %s687
        %v689 = vadd.s32 %v688, %v684
        %v690 = vadd.s32 %v688, %v685
        %v691 = vadd.s32 %v688, %v686
        %vm692 = vcmp.ge.s32.totalorder %v689, 0
        %vm693 = vcmp.ge.s32.totalorder %v690, 0
        %vm694 = vcmp.ge.s32.totalorder %v691, 0
        %vm695 = vcmp.lt.s32.totalorder %v689, 16
        %vm696 = vcmp.lt.s32.totalorder %v690, 16
        %vm697 = vcmp.lt.s32.totalorder %v691, 16
        %vm698 = vmand %vm692, %vm695
        %vm699 = vmand %vm693, %vm696
        %vm700 = vmand %vm694, %vm697
        %v701 = vsel %vm698, 1, 0
        %v702 = vsel %vm699, 1, 0
        %v703 = vsel %vm700, 1, 0
        %vm704 = vcmp.eq.s32.totalorder %v701, 1
        %vm705 = vcmp.eq.s32.totalorder %v702, 1
        %vm706 = vcmp.eq.s32.totalorder %v703, 1
        %v707 = vsel %vm704, %v647, -1e+30
        %v708 = vsel %vm705, %v648, -1e+30
        %v709 = vsel %vm706, %v649, -1e+30
        %v710 = vsel %vm704, %v650, -1e+30
        %v711 = vsel %vm705, %v651, -1e+30
        %v712 = vsel %vm706, %v652, -1e+30
        %v713 = vsel %vm704, %v653, -1e+30
        %v714 = vsel %vm705, %v654, -1e+30
        %v715 = vsel %vm706, %v655, -1e+30
        %v716 = vsel %vm704, %v656, -1e+30
        %v717 = vsel %vm705, %v657, -1e+30
        %v718 = vsel %vm706, %v658, -1e+30
        %v719 = vsel %vm704, %v671, -1e+30
        %v720 = vsel %vm705, %v672, -1e+30
        %v721 = vsel %vm706, %v673, -1e+30
        %v722 = vsel %vm704, %v674, -1e+30
        %v723 = vsel %vm705, %v675, -1e+30
        %v724 = vsel %vm706, %v676, -1e+30
        %v725 = vsel %vm704, %v677, -1e+30
        %v726 = vsel %vm705, %v678, -1e+30
        %v727 = vsel %vm706, %v679, -1e+30
        %v728 = vsel %vm704, %v680, -1e+30
        %v729 = vsel %vm705, %v681, -1e+30
        %v730 = vsel %vm706, %v682, -1e+30
        %743 = vrot.lane.b32.xlu0 %v707, 1
        %v744 = vpop.permute.xlu0 %743
        %745 = vrot.lane.b32.xlu0 %v708, 1
        %v746 = vpop.permute.xlu0 %745
        %747 = vrot.lane.b32.xlu0 %v709, 1
        %v748 = vpop.permute.xlu0 %747
        %749 = vrot.lane.b32.xlu0 %v710, 1
        %v750 = vpop.permute.xlu0 %749
        %751 = vrot.lane.b32.xlu0 %v711, 1
        %v752 = vpop.permute.xlu0 %751
        %753 = vrot.lane.b32.xlu0 %v712, 1
        %v754 = vpop.permute.xlu0 %753
        %755 = vrot.lane.b32.xlu0 %v713, 1
        %v756 = vpop.permute.xlu0 %755
        %757 = vrot.lane.b32.xlu0 %v714, 1
        %v758 = vpop.permute.xlu0 %757
        %759 = vrot.lane.b32.xlu0 %v715, 1
        %v760 = vpop.permute.xlu0 %759
        %761 = vrot.lane.b32.xlu0 %v716, 1
        %v762 = vpop.permute.xlu0 %761
        %763 = vrot.lane.b32.xlu0 %v717, 1
        %v764 = vpop.permute.xlu0 %763
        %765 = vrot.lane.b32.xlu0 %v718, 1
        %v766 = vpop.permute.xlu0 %765
        %vm779 = vcmask 7168
        %v780 = vsel %vm779, -1e+30, %v744
        %v781 = vsel %vm779, -1e+30, %v746
        %v782 = vsel %vm779, -1e+30, %v748
        %v783 = vsel %vm779, -1e+30, %v750
        %v784 = vsel %vm779, -1e+30, %v752
        %v785 = vsel %vm779, -1e+30, %v754
        %v786 = vsel %vm779, -1e+30, %v756
        %v787 = vsel %vm779, -1e+30, %v758
        %v788 = vsel %vm779, -1e+30, %v760
        %v789 = vsel %vm779, -1e+30, %v762
        %v790 = vsel %vm779, -1e+30, %v764
        %v791 = vsel %vm779, -1e+30, %v766
        %vm792 = vcmask 138240
        %v793 = vsel %vm792, %v780, -1e+30
        %v794 = vsel %vm792, %v781, -1e+30
        %v795 = vsel %vm792, %v782, -1e+30
        %v796 = vsel %vm792, %v783, -1e+30
        %v797 = vsel %vm792, %v784, -1e+30
        %v798 = vsel %vm792, %v785, -1e+30
        %v799 = vsel %vm792, %v786, -1e+30
        %v800 = vsel %vm792, %v787, -1e+30
        %v801 = vsel %vm792, %v788, -1e+30
        %v802 = vsel %vm792, %v789, -1e+30
        %v803 = vsel %vm792, %v790, -1e+30
        %v804 = vsel %vm792, %v791, -1e+30
        %817 = vrot.lane.b32.xlu0 %v793, 126
        %v818 = vpop.permute.xlu0 %817
        %819 = vrot.lane.b32.xlu0 %v794, 126
        %v820 = vpop.permute.xlu0 %819
        %821 = vrot.lane.b32.xlu0 %v795, 126
        %v822 = vpop.permute.xlu0 %821
        %823 = vrot.lane.b32.xlu0 %v796, 126
        %v824 = vpop.permute.xlu0 %823
        %825 = vrot.lane.b32.xlu0 %v797, 126
        %v826 = vpop.permute.xlu0 %825
        %827 = vrot.lane.b32.xlu0 %v798, 126
        %v828 = vpop.permute.xlu0 %827
        %829 = vrot.lane.b32.xlu0 %v799, 126
        %v830 = vpop.permute.xlu0 %829
        %831 = vrot.lane.b32.xlu0 %v800, 126
        %v832 = vpop.permute.xlu0 %831
        %833 = vrot.lane.b32.xlu0 %v801, 126
        %v834 = vpop.permute.xlu0 %833
        %835 = vrot.lane.b32.xlu0 %v802, 126
        %v836 = vpop.permute.xlu0 %835
        %837 = vrot.lane.b32.xlu0 %v803, 126
        %v838 = vpop.permute.xlu0 %837
        %839 = vrot.lane.b32.xlu0 %v804, 126
        %v840 = vpop.permute.xlu0 %839
        %v853 = vmax.f32 %v793, %v818
        %v854 = vmax.f32 %v794, %v820
        %v855 = vmax.f32 %v795, %v822
        %v856 = vmax.f32 %v796, %v824
        %v857 = vmax.f32 %v797, %v826
        %v858 = vmax.f32 %v798, %v828
        %v859 = vmax.f32 %v799, %v830
        %v860 = vmax.f32 %v800, %v832
        %v861 = vmax.f32 %v801, %v834
        %v862 = vmax.f32 %v802, %v836
        %v863 = vmax.f32 %v803, %v838
        %v864 = vmax.f32 %v804, %v840
        %v865 = vmax.f32 %v707, %v853
        %v866 = vmax.f32 %v708, %v854
        %v867 = vmax.f32 %v709, %v855
        %v868 = vmax.f32 %v710, %v856
        %v869 = vmax.f32 %v711, %v857
        %v870 = vmax.f32 %v712, %v858
        %v871 = vmax.f32 %v713, %v859
        %v872 = vmax.f32 %v714, %v860
        %v873 = vmax.f32 %v715, %v861
        %v874 = vmax.f32 %v716, %v862
        %v875 = vmax.f32 %v717, %v863
        %v876 = vmax.f32 %v718, %v864
        %889 = vrot.lane.b32.xlu0 %v719, 1
        %v890 = vpop.permute.xlu0 %889
        %891 = vrot.lane.b32.xlu0 %v720, 1
        %v892 = vpop.permute.xlu0 %891
        %893 = vrot.lane.b32.xlu0 %v721, 1
        %v894 = vpop.permute.xlu0 %893
        %895 = vrot.lane.b32.xlu0 %v722, 1
        %v896 = vpop.permute.xlu0 %895
        %897 = vrot.lane.b32.xlu0 %v723, 1
        %v898 = vpop.permute.xlu0 %897
        %899 = vrot.lane.b32.xlu0 %v724, 1
        %v900 = vpop.permute.xlu0 %899
        %901 = vrot.lane.b32.xlu0 %v725, 1
        %v902 = vpop.permute.xlu0 %901
        %903 = vrot.lane.b32.xlu0 %v726, 1
        %v904 = vpop.permute.xlu0 %903
        %905 = vrot.lane.b32.xlu0 %v727, 1
        %v906 = vpop.permute.xlu0 %905
        %907 = vrot.lane.b32.xlu0 %v728, 1
        %v908 = vpop.permute.xlu0 %907
        %909 = vrot.lane.b32.xlu0 %v729, 1
        %v910 = vpop.permute.xlu0 %909
        %911 = vrot.lane.b32.xlu0 %v730, 1
        %v912 = vpop.permute.xlu0 %911
        %v925 = vsel %vm779, -1e+30, %v890
        %v926 = vsel %vm779, -1e+30, %v892
        %v927 = vsel %vm779, -1e+30, %v894
        %v928 = vsel %vm779, -1e+30, %v896
        %v929 = vsel %vm779, -1e+30, %v898
        %v930 = vsel %vm779, -1e+30, %v900
        %v931 = vsel %vm779, -1e+30, %v902
        %v932 = vsel %vm779, -1e+30, %v904
        %v933 = vsel %vm779, -1e+30, %v906
        %v934 = vsel %vm779, -1e+30, %v908
        %v935 = vsel %vm779, -1e+30, %v910
        %v936 = vsel %vm779, -1e+30, %v912
        %v937 = vsel %vm792, %v925, -1e+30
        %v938 = vsel %vm792, %v926, -1e+30
        %v939 = vsel %vm792, %v927, -1e+30
        %v940 = vsel %vm792, %v928, -1e+30
        %v941 = vsel %vm792, %v929, -1e+30
        %v942 = vsel %vm792, %v930, -1e+30
        %v943 = vsel %vm792, %v931, -1e+30
        %v944 = vsel %vm792, %v932, -1e+30
        %v945 = vsel %vm792, %v933, -1e+30
        %v946 = vsel %vm792, %v934, -1e+30
        %v947 = vsel %vm792, %v935, -1e+30
        %v948 = vsel %vm792, %v936, -1e+30
        %961 = vrot.lane.b32.xlu0 %v937, 126
        %v962 = vpop.permute.xlu0 %961
        %963 = vrot.lane.b32.xlu0 %v938, 126
        %v964 = vpop.permute.xlu0 %963
        %965 = vrot.lane.b32.xlu0 %v939, 126
        %v966 = vpop.permute.xlu0 %965
        %967 = vrot.lane.b32.xlu0 %v940, 126
        %v968 = vpop.permute.xlu0 %967
        %969 = vrot.lane.b32.xlu0 %v941, 126
        %v970 = vpop.permute.xlu0 %969
        %971 = vrot.lane.b32.xlu0 %v942, 126
        %v972 = vpop.permute.xlu0 %971
        %973 = vrot.lane.b32.xlu0 %v943, 126
        %v974 = vpop.permute.xlu0 %973
        %975 = vrot.lane.b32.xlu0 %v944, 126
        %v976 = vpop.permute.xlu0 %975
        %977 = vrot.lane.b32.xlu0 %v945, 126
        %v978 = vpop.permute.xlu0 %977
        %979 = vrot.lane.b32.xlu0 %v946, 126
        %v980 = vpop.permute.xlu0 %979
        %981 = vrot.lane.b32.xlu0 %v947, 126
        %v982 = vpop.permute.xlu0 %981
        %983 = vrot.lane.b32.xlu0 %v948, 126
        %v984 = vpop.permute.xlu0 %983
        %v997 = vmax.f32 %v937, %v962
        %v998 = vmax.f32 %v938, %v964
        %v999 = vmax.f32 %v939, %v966
        %v1000 = vmax.f32 %v940, %v968
        %v1001 = vmax.f32 %v941, %v970
        %v1002 = vmax.f32 %v942, %v972
        %v1003 = vmax.f32 %v943, %v974
        %v1004 = vmax.f32 %v944, %v976
        %v1005 = vmax.f32 %v945, %v978
        %v1006 = vmax.f32 %v946, %v980
        %v1007 = vmax.f32 %v947, %v982
        %v1008 = vmax.f32 %v948, %v984
        %v1009 = vmax.f32 %v719, %v997
        %v1010 = vmax.f32 %v720, %v998
        %v1011 = vmax.f32 %v721, %v999
        %v1012 = vmax.f32 %v722, %v1000
        %v1013 = vmax.f32 %v723, %v1001
        %v1014 = vmax.f32 %v724, %v1002
        %v1015 = vmax.f32 %v725, %v1003
        %v1016 = vmax.f32 %v726, %v1004
        %v1017 = vmax.f32 %v727, %v1005
        %v1018 = vmax.f32 %v728, %v1006
        %v1019 = vmax.f32 %v729, %v1007
        %v1020 = vmax.f32 %v730, %v1008
        %vm1033 = vcmask 1040384
        %v1034 = vrot.slane %v865, 7
        %v1035 = vrot.slane %v866, 7
        %v1036 = vsel %vm1033, %v1034, %v1035
        %v1037 = vrot.slane %v867, 7
        %v1038 = vsel %vm1033, %v1035, %v1037
        %v1039 = vrot.slane %v868, 7
        %v1040 = vrot.slane %v869, 7
        %v1041 = vsel %vm1033, %v1039, %v1040
        %v1042 = vrot.slane %v870, 7
        %v1043 = vsel %vm1033, %v1040, %v1042
        %v1044 = vrot.slane %v871, 7
        %v1045 = vrot.slane %v872, 7
        %v1046 = vsel %vm1033, %v1044, %v1045
        %v1047 = vrot.slane %v873, 7
        %v1048 = vsel %vm1033, %v1045, %v1047
        %v1049 = vrot.slane %v874, 7
        %v1050 = vrot.slane %v875, 7
        %v1051 = vsel %vm1033, %v1049, %v1050
        %v1052 = vrot.slane %v876, 7
        %v1053 = vsel %vm1033, %v1050, %v1052
        %v1066 = vmax.f32 %v865, %v1034
        %v1067 = vmax.f32 %v866, %v1036
        %v1068 = vmax.f32 %v867, %v1038
        %v1069 = vmax.f32 %v868, %v1039
        %v1070 = vmax.f32 %v869, %v1041
        %v1071 = vmax.f32 %v870, %v1043
        %v1072 = vmax.f32 %v871, %v1044
        %v1073 = vmax.f32 %v872, %v1046
        %v1074 = vmax.f32 %v873, %v1048
        %v1075 = vmax.f32 %v874, %v1049
        %v1076 = vmax.f32 %v875, %v1051
        %v1077 = vmax.f32 %v876, %v1053
        %vm1078 = vcmask 1046528
        %v1079 = vrot.slane %v865, 1
        %v1080 = vrot.slane %v866, 1
        %v1081 = vsel %vm1078, %v1079, %v1080
        %v1082 = vrot.slane %v867, 1
        %v1083 = vsel %vm1078, %v1080, %v1082
        %v1084 = vrot.slane %v868, 1
        %v1085 = vrot.slane %v869, 1
        %v1086 = vsel %vm1078, %v1084, %v1085
        %v1087 = vrot.slane %v870, 1
        %v1088 = vsel %vm1078, %v1085, %v1087
        %v1089 = vrot.slane %v871, 1
        %v1090 = vrot.slane %v872, 1
        %v1091 = vsel %vm1078, %v1089, %v1090
        %v1092 = vrot.slane %v873, 1
        %v1093 = vsel %vm1078, %v1090, %v1092
        %v1094 = vrot.slane %v874, 1
        %v1095 = vrot.slane %v875, 1
        %v1096 = vsel %vm1078, %v1094, %v1095
        %v1097 = vrot.slane %v876, 1
        %v1098 = vsel %vm1078, %v1095, %v1097
        %v1111 = vmax.f32 %v1066, %v1081
        %v1112 = vmax.f32 %v1067, %v1083
        %v1113 = vmax.f32 %v1068, %v1082
        %v1114 = vmax.f32 %v1069, %v1086
        %v1115 = vmax.f32 %v1070, %v1088
        %v1116 = vmax.f32 %v1071, %v1087
        %v1117 = vmax.f32 %v1072, %v1091
        %v1118 = vmax.f32 %v1073, %v1093
        %v1119 = vmax.f32 %v1074, %v1092
        %v1120 = vmax.f32 %v1075, %v1096
        %v1121 = vmax.f32 %v1076, %v1098
        %v1122 = vmax.f32 %v1077, %v1097
        %v1123 = vsub.f32 %v1111, %v707
        %v1124 = vsub.f32 %v1112, %v708
        %v1125 = vsub.f32 %v1113, %v709
        %v1126 = vsub.f32 %v1114, %v710
        %v1127 = vsub.f32 %v1115, %v711
        %v1128 = vsub.f32 %v1116, %v712
        %v1129 = vsub.f32 %v1117, %v713
        %v1130 = vsub.f32 %v1118, %v714
        %v1131 = vsub.f32 %v1119, %v715
        %v1132 = vsub.f32 %v1120, %v716
        %v1133 = vsub.f32 %v1121, %v717
        %v1134 = vsub.f32 %v1122, %v718
        %v1147 = vrot.slane %v1009, 7
        %v1148 = vrot.slane %v1010, 7
        %v1149 = vsel %vm1033, %v1147, %v1148
        %v1150 = vrot.slane %v1011, 7
        %v1151 = vsel %vm1033, %v1148, %v1150
        %v1152 = vrot.slane %v1012, 7
        %v1153 = vrot.slane %v1013, 7
        %v1154 = vsel %vm1033, %v1152, %v1153
        %v1155 = vrot.slane %v1014, 7
        %v1156 = vsel %vm1033, %v1153, %v1155
        %v1157 = vrot.slane %v1015, 7
        %v1158 = vrot.slane %v1016, 7
        %v1159 = vsel %vm1033, %v1157, %v1158
        %v1160 = vrot.slane %v1017, 7
        %v1161 = vsel %vm1033, %v1158, %v1160
        %v1162 = vrot.slane %v1018, 7
        %v1163 = vrot.slane %v1019, 7
        %v1164 = vsel %vm1033, %v1162, %v1163
        %v1165 = vrot.slane %v1020, 7
        %v1166 = vsel %vm1033, %v1163, %v1165
        %v1179 = vmax.f32 %v1009, %v1147
        %v1180 = vmax.f32 %v1010, %v1149
        %v1181 = vmax.f32 %v1011, %v1151
        %v1182 = vmax.f32 %v1012, %v1152
        %v1183 = vmax.f32 %v1013, %v1154
        %v1184 = vmax.f32 %v1014, %v1156
        %v1185 = vmax.f32 %v1015, %v1157
        %v1186 = vmax.f32 %v1016, %v1159
        %v1187 = vmax.f32 %v1017, %v1161
        %v1188 = vmax.f32 %v1018, %v1162
        %v1189 = vmax.f32 %v1019, %v1164
        %v1190 = vmax.f32 %v1020, %v1166
        %v1191 = vrot.slane %v1009, 1
        %v1192 = vrot.slane %v1010, 1
        %v1193 = vsel %vm1078, %v1191, %v1192
        %v1194 = vrot.slane %v1011, 1
        %v1195 = vsel %vm1078, %v1192, %v1194
        %v1196 = vrot.slane %v1012, 1
        %v1197 = vrot.slane %v1013, 1
        %v1198 = vsel %vm1078, %v1196, %v1197
        %v1199 = vrot.slane %v1014, 1
        %v1200 = vsel %vm1078, %v1197, %v1199
        %v1201 = vrot.slane %v1015, 1
        %v1202 = vrot.slane %v1016, 1
        %v1203 = vsel %vm1078, %v1201, %v1202
        %v1204 = vrot.slane %v1017, 1
        %v1205 = vsel %vm1078, %v1202, %v1204
        %v1206 = vrot.slane %v1018, 1
        %v1207 = vrot.slane %v1019, 1
        %v1208 = vsel %vm1078, %v1206, %v1207
        %v1209 = vrot.slane %v1020, 1
        %v1210 = vsel %vm1078, %v1207, %v1209
        %v1223 = vmax.f32 %v1179, %v1193
        %v1224 = vmax.f32 %v1180, %v1195
        %v1225 = vmax.f32 %v1181, %v1194
        %v1226 = vmax.f32 %v1182, %v1198
        %v1227 = vmax.f32 %v1183, %v1200
        %v1228 = vmax.f32 %v1184, %v1199
        %v1229 = vmax.f32 %v1185, %v1203
        %v1230 = vmax.f32 %v1186, %v1205
        %v1231 = vmax.f32 %v1187, %v1204
        %v1232 = vmax.f32 %v1188, %v1208
        %v1233 = vmax.f32 %v1189, %v1210
        %v1234 = vmax.f32 %v1190, %v1209
        %v1235 = vsub.f32 %v1223, %v719
        %v1236 = vsub.f32 %v1224, %v720
        %v1237 = vsub.f32 %v1225, %v721
        %v1238 = vsub.f32 %v1226, %v722
        %v1239 = vsub.f32 %v1227, %v723
        %v1240 = vsub.f32 %v1228, %v724
        %v1241 = vsub.f32 %v1229, %v725
        %v1242 = vsub.f32 %v1230, %v726
        %v1243 = vsub.f32 %v1231, %v727
        %v1244 = vsub.f32 %v1232, %v728
        %v1245 = vsub.f32 %v1233, %v729
        %v1246 = vsub.f32 %v1234, %v730
        %v1247 = vsel %vm704, %v1123, -1e+30
        %v1248 = vsel %vm705, %v1124, -1e+30
        %v1249 = vsel %vm706, %v1125, -1e+30
        %v1250 = vsel %vm704, %v1126, -1e+30
        %v1251 = vsel %vm705, %v1127, -1e+30
        %v1252 = vsel %vm706, %v1128, -1e+30
        %v1253 = vsel %vm704, %v1129, -1e+30
        %v1254 = vsel %vm705, %v1130, -1e+30
        %v1255 = vsel %vm706, %v1131, -1e+30
        %v1256 = vsel %vm704, %v1132, -1e+30
        %v1257 = vsel %vm705, %v1133, -1e+30
        %v1258 = vsel %vm706, %v1134, -1e+30
        %v1259 = vsel %vm704, %v1235, -1e+30
        %v1260 = vsel %vm705, %v1236, -1e+30
        %v1261 = vsel %vm706, %v1237, -1e+30
        %v1262 = vsel %vm704, %v1238, -1e+30
        %v1263 = vsel %vm705, %v1239, -1e+30
        %v1264 = vsel %vm706, %v1240, -1e+30
        %v1265 = vsel %vm704, %v1241, -1e+30
        %v1266 = vsel %vm705, %v1242, -1e+30
        %v1267 = vsel %vm706, %v1243, -1e+30
        %v1268 = vsel %vm704, %v1244, -1e+30
        %v1269 = vsel %vm705, %v1245, -1e+30
        %v1270 = vsel %vm706, %v1246, -1e+30
        %vm1283 = vcmask 1041408
        %v1284 = vrot.slane %v1247, 6
        %v1285 = vrot.slane %v1248, 6
        %v1286 = vsel %vm1283, %v1284, %v1285
        %v1287 = vrot.slane %v1249, 6
        %v1288 = vsel %vm1283, %v1285, %v1287
        %v1289 = vrot.slane %v1250, 6
        %v1290 = vrot.slane %v1251, 6
        %v1291 = vsel %vm1283, %v1289, %v1290
        %v1292 = vrot.slane %v1252, 6
        %v1293 = vsel %vm1283, %v1290, %v1292
        %v1294 = vrot.slane %v1253, 6
        %v1295 = vrot.slane %v1254, 6
        %v1296 = vsel %vm1283, %v1294, %v1295
        %v1297 = vrot.slane %v1255, 6
        %v1298 = vsel %vm1283, %v1295, %v1297
        %v1299 = vrot.slane %v1256, 6
        %v1300 = vrot.slane %v1257, 6
        %v1301 = vsel %vm1283, %v1299, %v1300
        %v1302 = vrot.slane %v1258, 6
        %v1303 = vsel %vm1283, %v1300, %v1302
        %1304 = vrot.lane.b32.xlu0 %v1286, 2
        %v1305 = vpop.permute.xlu0 %1304
        %1306 = vrot.lane.b32.xlu0 %v1288, 2
        %v1307 = vpop.permute.xlu0 %1306
        %1308 = vrot.lane.b32.xlu0 %v1291, 2
        %v1309 = vpop.permute.xlu0 %1308
        %1310 = vrot.lane.b32.xlu0 %v1293, 2
        %v1311 = vpop.permute.xlu0 %1310
        %1312 = vrot.lane.b32.xlu0 %v1296, 2
        %v1313 = vpop.permute.xlu0 %1312
        %1314 = vrot.lane.b32.xlu0 %v1298, 2
        %v1315 = vpop.permute.xlu0 %1314
        %1316 = vrot.lane.b32.xlu0 %v1301, 2
        %v1317 = vpop.permute.xlu0 %1316
        %1318 = vrot.lane.b32.xlu0 %v1303, 2
        %v1319 = vpop.permute.xlu0 %1318
        %vm1328 = vcmask 15360
        %v1329 = vsel %vm1328, -1e+30, %v1305
        %v1330 = vsel %vm1328, -1e+30, %v1307
        %v1331 = vsel %vm1328, -1e+30, %v1309
        %v1332 = vsel %vm1328, -1e+30, %v1311
        %v1333 = vsel %vm1328, -1e+30, %v1313
        %v1334 = vsel %vm1328, -1e+30, %v1315
        %v1335 = vsel %vm1328, -1e+30, %v1317
        %v1336 = vsel %vm1328, -1e+30, %v1319
        %vm1337 = vcmask 146432
        %v1338 = vsel %vm1337, %v1329, -1e+30
        %v1339 = vsel %vm1337, %v1330, -1e+30
        %v1340 = vsel %vm1337, %v1331, -1e+30
        %v1341 = vsel %vm1337, %v1332, -1e+30
        %v1342 = vsel %vm1337, %v1333, -1e+30
        %v1343 = vsel %vm1337, %v1334, -1e+30
        %v1344 = vsel %vm1337, %v1335, -1e+30
        %v1345 = vsel %vm1337, %v1336, -1e+30
        %1354 = vrot.lane.b32.xlu0 %v1338, 126
        %v1355 = vpop.permute.xlu0 %1354
        %1356 = vrot.lane.b32.xlu0 %v1339, 126
        %v1357 = vpop.permute.xlu0 %1356
        %1358 = vrot.lane.b32.xlu0 %v1340, 126
        %v1359 = vpop.permute.xlu0 %1358
        %1360 = vrot.lane.b32.xlu0 %v1341, 126
        %v1361 = vpop.permute.xlu0 %1360
        %1362 = vrot.lane.b32.xlu0 %v1342, 126
        %v1363 = vpop.permute.xlu0 %1362
        %1364 = vrot.lane.b32.xlu0 %v1343, 126
        %v1365 = vpop.permute.xlu0 %1364
        %1366 = vrot.lane.b32.xlu0 %v1344, 126
        %v1367 = vpop.permute.xlu0 %1366
        %1368 = vrot.lane.b32.xlu0 %v1345, 126
        %v1369 = vpop.permute.xlu0 %1368
        %v1378 = vmax.f32 %v1338, %v1355
        %v1379 = vmax.f32 %v1339, %v1357
        %v1380 = vmax.f32 %v1340, %v1359
        %v1381 = vmax.f32 %v1341, %v1361
        %v1382 = vmax.f32 %v1342, %v1363
        %v1383 = vmax.f32 %v1343, %v1365
        %v1384 = vmax.f32 %v1344, %v1367
        %v1385 = vmax.f32 %v1345, %v1369
        %vm1394 = vcmask 1045504
        %v1395 = vrot.slane %v1378, 2
        %v1396 = vrot.slane %v1379, 2
        %v1397 = vsel %vm1394, %v1395, %v1396
        %v1398 = vrot.slane %v1380, 2
        %v1399 = vrot.slane %v1381, 2
        %v1400 = vsel %vm1394, %v1398, %v1399
        %v1401 = vrot.slane %v1382, 2
        %v1402 = vrot.slane %v1383, 2
        %v1403 = vsel %vm1394, %v1401, %v1402
        %v1404 = vrot.slane %v1384, 2
        %v1405 = vrot.slane %v1385, 2
        %v1406 = vsel %vm1394, %v1404, %v1405
        %1407 = vrot.lane.b32.xlu0 %v1395, 127
        %v1408 = vpop.permute.xlu0 %1407
        %1409 = vrot.lane.b32.xlu0 %v1397, 127
        %v1410 = vpop.permute.xlu0 %1409
        %1411 = vrot.lane.b32.xlu0 %v1396, 127
        %v1412 = vpop.permute.xlu0 %1411
        %1413 = vrot.lane.b32.xlu0 %v1398, 127
        %v1414 = vpop.permute.xlu0 %1413
        %1415 = vrot.lane.b32.xlu0 %v1400, 127
        %v1416 = vpop.permute.xlu0 %1415
        %1417 = vrot.lane.b32.xlu0 %v1399, 127
        %v1418 = vpop.permute.xlu0 %1417
        %1419 = vrot.lane.b32.xlu0 %v1401, 127
        %v1420 = vpop.permute.xlu0 %1419
        %1421 = vrot.lane.b32.xlu0 %v1403, 127
        %v1422 = vpop.permute.xlu0 %1421
        %1423 = vrot.lane.b32.xlu0 %v1402, 127
        %v1424 = vpop.permute.xlu0 %1423
        %1425 = vrot.lane.b32.xlu0 %v1404, 127
        %v1426 = vpop.permute.xlu0 %1425
        %1427 = vrot.lane.b32.xlu0 %v1406, 127
        %v1428 = vpop.permute.xlu0 %1427
        %1429 = vrot.lane.b32.xlu0 %v1405, 127
        %v1430 = vpop.permute.xlu0 %1429
        %v1443 = vmax.f32 %v1247, %v1408
        %v1444 = vmax.f32 %v1248, %v1410
        %v1445 = vmax.f32 %v1249, %v1412
        %v1446 = vmax.f32 %v1250, %v1414
        %v1447 = vmax.f32 %v1251, %v1416
        %v1448 = vmax.f32 %v1252, %v1418
        %v1449 = vmax.f32 %v1253, %v1420
        %v1450 = vmax.f32 %v1254, %v1422
        %v1451 = vmax.f32 %v1255, %v1424
        %v1452 = vmax.f32 %v1256, %v1426
        %v1453 = vmax.f32 %v1257, %v1428
        %v1454 = vmax.f32 %v1258, %v1430
        %1455 = vrot.lane.b32.xlu0 %v1338, 124
        %v1456 = vpop.permute.xlu0 %1455
        %1457 = vrot.lane.b32.xlu0 %v1339, 124
        %v1458 = vpop.permute.xlu0 %1457
        %1459 = vrot.lane.b32.xlu0 %v1340, 124
        %v1460 = vpop.permute.xlu0 %1459
        %1461 = vrot.lane.b32.xlu0 %v1341, 124
        %v1462 = vpop.permute.xlu0 %1461
        %1463 = vrot.lane.b32.xlu0 %v1342, 124
        %v1464 = vpop.permute.xlu0 %1463
        %1465 = vrot.lane.b32.xlu0 %v1343, 124
        %v1466 = vpop.permute.xlu0 %1465
        %1467 = vrot.lane.b32.xlu0 %v1344, 124
        %v1468 = vpop.permute.xlu0 %1467
        %1469 = vrot.lane.b32.xlu0 %v1345, 124
        %v1470 = vpop.permute.xlu0 %1469
        %v1479 = vmax.f32 %v1338, %v1456
        %v1480 = vmax.f32 %v1339, %v1458
        %v1481 = vmax.f32 %v1340, %v1460
        %v1482 = vmax.f32 %v1341, %v1462
        %v1483 = vmax.f32 %v1342, %v1464
        %v1484 = vmax.f32 %v1343, %v1466
        %v1485 = vmax.f32 %v1344, %v1468
        %v1486 = vmax.f32 %v1345, %v1470
        %v1495 = vrot.slane %v1479, 2
        %v1496 = vrot.slane %v1480, 2
        %v1497 = vsel %vm1394, %v1495, %v1496
        %v1498 = vrot.slane %v1481, 2
        %v1499 = vrot.slane %v1482, 2
        %v1500 = vsel %vm1394, %v1498, %v1499
        %v1501 = vrot.slane %v1483, 2
        %v1502 = vrot.slane %v1484, 2
        %v1503 = vsel %vm1394, %v1501, %v1502
        %v1504 = vrot.slane %v1485, 2
        %v1505 = vrot.slane %v1486, 2
        %v1506 = vsel %vm1394, %v1504, %v1505
        %v1519 = vmax.f32 %v1443, %v1495
        %v1520 = vmax.f32 %v1444, %v1497
        %v1521 = vmax.f32 %v1445, %v1496
        %v1522 = vmax.f32 %v1446, %v1498
        %v1523 = vmax.f32 %v1447, %v1500
        %v1524 = vmax.f32 %v1448, %v1499
        %v1525 = vmax.f32 %v1449, %v1501
        %v1526 = vmax.f32 %v1450, %v1503
        %v1527 = vmax.f32 %v1451, %v1502
        %v1528 = vmax.f32 %v1452, %v1504
        %v1529 = vmax.f32 %v1453, %v1506
        %v1530 = vmax.f32 %v1454, %v1505
        %v1543 = vrot.slane %v1259, 6
        %v1544 = vrot.slane %v1260, 6
        %v1545 = vsel %vm1283, %v1543, %v1544
        %v1546 = vrot.slane %v1261, 6
        %v1547 = vsel %vm1283, %v1544, %v1546
        %v1548 = vrot.slane %v1262, 6
        %v1549 = vrot.slane %v1263, 6
        %v1550 = vsel %vm1283, %v1548, %v1549
        %v1551 = vrot.slane %v1264, 6
        %v1552 = vsel %vm1283, %v1549, %v1551
        %v1553 = vrot.slane %v1265, 6
        %v1554 = vrot.slane %v1266, 6
        %v1555 = vsel %vm1283, %v1553, %v1554
        %v1556 = vrot.slane %v1267, 6
        %v1557 = vsel %vm1283, %v1554, %v1556
        %v1558 = vrot.slane %v1268, 6
        %v1559 = vrot.slane %v1269, 6
        %v1560 = vsel %vm1283, %v1558, %v1559
        %v1561 = vrot.slane %v1270, 6
        %v1562 = vsel %vm1283, %v1559, %v1561
        %1563 = vrot.lane.b32.xlu0 %v1545, 2
        %v1564 = vpop.permute.xlu0 %1563
        %1565 = vrot.lane.b32.xlu0 %v1547, 2
        %v1566 = vpop.permute.xlu0 %1565
        %1567 = vrot.lane.b32.xlu0 %v1550, 2
        %v1568 = vpop.permute.xlu0 %1567
        %1569 = vrot.lane.b32.xlu0 %v1552, 2
        %v1570 = vpop.permute.xlu0 %1569
        %1571 = vrot.lane.b32.xlu0 %v1555, 2
        %v1572 = vpop.permute.xlu0 %1571
        %1573 = vrot.lane.b32.xlu0 %v1557, 2
        %v1574 = vpop.permute.xlu0 %1573
        %1575 = vrot.lane.b32.xlu0 %v1560, 2
        %v1576 = vpop.permute.xlu0 %1575
        %1577 = vrot.lane.b32.xlu0 %v1562, 2
        %v1578 = vpop.permute.xlu0 %1577
        %v1587 = vsel %vm1328, -1e+30, %v1564
        %v1588 = vsel %vm1328, -1e+30, %v1566
        %v1589 = vsel %vm1328, -1e+30, %v1568
        %v1590 = vsel %vm1328, -1e+30, %v1570
        %v1591 = vsel %vm1328, -1e+30, %v1572
        %v1592 = vsel %vm1328, -1e+30, %v1574
        %v1593 = vsel %vm1328, -1e+30, %v1576
        %v1594 = vsel %vm1328, -1e+30, %v1578
        %v1595 = vsel %vm1337, %v1587, -1e+30
        %v1596 = vsel %vm1337, %v1588, -1e+30
        %v1597 = vsel %vm1337, %v1589, -1e+30
        %v1598 = vsel %vm1337, %v1590, -1e+30
        %v1599 = vsel %vm1337, %v1591, -1e+30
        %v1600 = vsel %vm1337, %v1592, -1e+30
        %v1601 = vsel %vm1337, %v1593, -1e+30
        %v1602 = vsel %vm1337, %v1594, -1e+30
        %1611 = vrot.lane.b32.xlu0 %v1595, 126
        %v1612 = vpop.permute.xlu0 %1611
        %1613 = vrot.lane.b32.xlu0 %v1596, 126
        %v1614 = vpop.permute.xlu0 %1613
        %1615 = vrot.lane.b32.xlu0 %v1597, 126
        %v1616 = vpop.permute.xlu0 %1615
        %1617 = vrot.lane.b32.xlu0 %v1598, 126
        %v1618 = vpop.permute.xlu0 %1617
        %1619 = vrot.lane.b32.xlu0 %v1599, 126
        %v1620 = vpop.permute.xlu0 %1619
        %1621 = vrot.lane.b32.xlu0 %v1600, 126
        %v1622 = vpop.permute.xlu0 %1621
        %1623 = vrot.lane.b32.xlu0 %v1601, 126
        %v1624 = vpop.permute.xlu0 %1623
        %1625 = vrot.lane.b32.xlu0 %v1602, 126
        %v1626 = vpop.permute.xlu0 %1625
        %v1635 = vmax.f32 %v1595, %v1612
        %v1636 = vmax.f32 %v1596, %v1614
        %v1637 = vmax.f32 %v1597, %v1616
        %v1638 = vmax.f32 %v1598, %v1618
        %v1639 = vmax.f32 %v1599, %v1620
        %v1640 = vmax.f32 %v1600, %v1622
        %v1641 = vmax.f32 %v1601, %v1624
        %v1642 = vmax.f32 %v1602, %v1626
        %v1651 = vrot.slane %v1635, 2
        %v1652 = vrot.slane %v1636, 2
        %v1653 = vsel %vm1394, %v1651, %v1652
        %v1654 = vrot.slane %v1637, 2
        %v1655 = vrot.slane %v1638, 2
        %v1656 = vsel %vm1394, %v1654, %v1655
        %v1657 = vrot.slane %v1639, 2
        %v1658 = vrot.slane %v1640, 2
        %v1659 = vsel %vm1394, %v1657, %v1658
        %v1660 = vrot.slane %v1641, 2
        %v1661 = vrot.slane %v1642, 2
        %v1662 = vsel %vm1394, %v1660, %v1661
        %1663 = vrot.lane.b32.xlu0 %v1651, 127
        %v1664 = vpop.permute.xlu0 %1663
        %1665 = vrot.lane.b32.xlu0 %v1653, 127
        %v1666 = vpop.permute.xlu0 %1665
        %1667 = vrot.lane.b32.xlu0 %v1652, 127
        %v1668 = vpop.permute.xlu0 %1667
        %1669 = vrot.lane.b32.xlu0 %v1654, 127
        %v1670 = vpop.permute.xlu0 %1669
        %1671 = vrot.lane.b32.xlu0 %v1656, 127
        %v1672 = vpop.permute.xlu0 %1671
        %1673 = vrot.lane.b32.xlu0 %v1655, 127
        %v1674 = vpop.permute.xlu0 %1673
        %1675 = vrot.lane.b32.xlu0 %v1657, 127
        %v1676 = vpop.permute.xlu0 %1675
        %1677 = vrot.lane.b32.xlu0 %v1659, 127
        %v1678 = vpop.permute.xlu0 %1677
        %1679 = vrot.lane.b32.xlu0 %v1658, 127
        %v1680 = vpop.permute.xlu0 %1679
        %1681 = vrot.lane.b32.xlu0 %v1660, 127
        %v1682 = vpop.permute.xlu0 %1681
        %1683 = vrot.lane.b32.xlu0 %v1662, 127
        %v1684 = vpop.permute.xlu0 %1683
        %1685 = vrot.lane.b32.xlu0 %v1661, 127
        %v1686 = vpop.permute.xlu0 %1685
        %v1699 = vmax.f32 %v1259, %v1664
        %v1700 = vmax.f32 %v1260, %v1666
        %v1701 = vmax.f32 %v1261, %v1668
        %v1702 = vmax.f32 %v1262, %v1670
        %v1703 = vmax.f32 %v1263, %v1672
        %v1704 = vmax.f32 %v1264, %v1674
        %v1705 = vmax.f32 %v1265, %v1676
        %v1706 = vmax.f32 %v1266, %v1678
        %v1707 = vmax.f32 %v1267, %v1680
        %v1708 = vmax.f32 %v1268, %v1682
        %v1709 = vmax.f32 %v1269, %v1684
        %v1710 = vmax.f32 %v1270, %v1686
        %1711 = vrot.lane.b32.xlu0 %v1595, 124
        %v1712 = vpop.permute.xlu0 %1711
        %1713 = vrot.lane.b32.xlu0 %v1596, 124
        %v1714 = vpop.permute.xlu0 %1713
        %1715 = vrot.lane.b32.xlu0 %v1597, 124
        %v1716 = vpop.permute.xlu0 %1715
        %1717 = vrot.lane.b32.xlu0 %v1598, 124
        %v1718 = vpop.permute.xlu0 %1717
        %1719 = vrot.lane.b32.xlu0 %v1599, 124
        %v1720 = vpop.permute.xlu0 %1719
        %1721 = vrot.lane.b32.xlu0 %v1600, 124
        %v1722 = vpop.permute.xlu0 %1721
        %1723 = vrot.lane.b32.xlu0 %v1601, 124
        %v1724 = vpop.permute.xlu0 %1723
        %1725 = vrot.lane.b32.xlu0 %v1602, 124
        %v1726 = vpop.permute.xlu0 %1725
        %v1735 = vmax.f32 %v1595, %v1712
        %v1736 = vmax.f32 %v1596, %v1714
        %v1737 = vmax.f32 %v1597, %v1716
        %v1738 = vmax.f32 %v1598, %v1718
        %v1739 = vmax.f32 %v1599, %v1720
        %v1740 = vmax.f32 %v1600, %v1722
        %v1741 = vmax.f32 %v1601, %v1724
        %v1742 = vmax.f32 %v1602, %v1726
        %v1751 = vrot.slane %v1735, 2
        %v1752 = vrot.slane %v1736, 2
        %v1753 = vsel %vm1394, %v1751, %v1752
        %v1754 = vrot.slane %v1737, 2
        %v1755 = vrot.slane %v1738, 2
        %v1756 = vsel %vm1394, %v1754, %v1755
        %v1757 = vrot.slane %v1739, 2
        %v1758 = vrot.slane %v1740, 2
        %v1759 = vsel %vm1394, %v1757, %v1758
        %v1760 = vrot.slane %v1741, 2
        %v1761 = vrot.slane %v1742, 2
        %v1762 = vsel %vm1394, %v1760, %v1761
        %v1775 = vmax.f32 %v1699, %v1751
        %v1776 = vmax.f32 %v1700, %v1753
        %v1777 = vmax.f32 %v1701, %v1752
        %v1778 = vmax.f32 %v1702, %v1754
        %v1779 = vmax.f32 %v1703, %v1756
        %v1780 = vmax.f32 %v1704, %v1755
        %v1781 = vmax.f32 %v1705, %v1757
        %v1782 = vmax.f32 %v1706, %v1759
        %v1783 = vmax.f32 %v1707, %v1758
        %v1784 = vmax.f32 %v1708, %v1760
        %v1785 = vmax.f32 %v1709, %v1762
        %v1786 = vmax.f32 %v1710, %v1761
        %v1795 = vrot.slane %v1519, 7
        %v1796 = vrot.slane %v1520, 7
        %v1797 = vsel %vm1033, %v1795, %v1796
        %v1798 = vrot.slane %v1522, 7
        %v1799 = vrot.slane %v1523, 7
        %v1800 = vsel %vm1033, %v1798, %v1799
        %v1801 = vrot.slane %v1525, 7
        %v1802 = vrot.slane %v1526, 7
        %v1803 = vsel %vm1033, %v1801, %v1802
        %v1804 = vrot.slane %v1528, 7
        %v1805 = vrot.slane %v1529, 7
        %v1806 = vsel %vm1033, %v1804, %v1805
        %v1811 = vmax.f32 %v1520, %v1797
        %v1812 = vmax.f32 %v1523, %v1800
        %v1813 = vmax.f32 %v1526, %v1803
        %v1814 = vmax.f32 %v1529, %v1806
        %v1819 = vrot.slane %v1520, 1
        %v1820 = vrot.slane %v1521, 1
        %v1821 = vsel %vm1078, %v1819, %v1820
        %v1822 = vrot.slane %v1523, 1
        %v1823 = vrot.slane %v1524, 1
        %v1824 = vsel %vm1078, %v1822, %v1823
        %v1825 = vrot.slane %v1526, 1
        %v1826 = vrot.slane %v1527, 1
        %v1827 = vsel %vm1078, %v1825, %v1826
        %v1828 = vrot.slane %v1529, 1
        %v1829 = vrot.slane %v1530, 1
        %v1830 = vsel %vm1078, %v1828, %v1829
        %v1835 = vmax.f32 %v1811, %v1821
        %v1836 = vmax.f32 %v1812, %v1824
        %v1837 = vmax.f32 %v1813, %v1827
        %v1838 = vmax.f32 %v1814, %v1830
        %v1839 = vrot.slane %v1519, 6
        %v1840 = vrot.slane %v1520, 6
        %v1841 = vsel %vm1283, %v1839, %v1840
        %v1842 = vrot.slane %v1522, 6
        %v1843 = vrot.slane %v1523, 6
        %v1844 = vsel %vm1283, %v1842, %v1843
        %v1845 = vrot.slane %v1525, 6
        %v1846 = vrot.slane %v1526, 6
        %v1847 = vsel %vm1283, %v1845, %v1846
        %v1848 = vrot.slane %v1528, 6
        %v1849 = vrot.slane %v1529, 6
        %v1850 = vsel %vm1283, %v1848, %v1849
        %v1855 = vmax.f32 %v1835, %v1841
        %v1856 = vmax.f32 %v1836, %v1844
        %v1857 = vmax.f32 %v1837, %v1847
        %v1858 = vmax.f32 %v1838, %v1850
        %v1859 = vrot.slane %v1520, 2
        %v1860 = vrot.slane %v1521, 2
        %v1861 = vsel %vm1394, %v1859, %v1860
        %v1862 = vrot.slane %v1523, 2
        %v1863 = vrot.slane %v1524, 2
        %v1864 = vsel %vm1394, %v1862, %v1863
        %v1865 = vrot.slane %v1526, 2
        %v1866 = vrot.slane %v1527, 2
        %v1867 = vsel %vm1394, %v1865, %v1866
        %v1868 = vrot.slane %v1529, 2
        %v1869 = vrot.slane %v1530, 2
        %v1870 = vsel %vm1394, %v1868, %v1869
        %v1875 = vmax.f32 %v1855, %v1861
        %v1876 = vmax.f32 %v1856, %v1864
        %v1877 = vmax.f32 %v1857, %v1867
        %v1878 = vmax.f32 %v1858, %v1870
        %v1887 = vrot.slane %v1775, 7
        %v1888 = vrot.slane %v1776, 7
        %v1889 = vsel %vm1033, %v1887, %v1888
        %v1890 = vrot.slane %v1778, 7
        %v1891 = vrot.slane %v1779, 7
        %v1892 = vsel %vm1033, %v1890, %v1891
        %v1893 = vrot.slane %v1781, 7
        %v1894 = vrot.slane %v1782, 7
        %v1895 = vsel %vm1033, %v1893, %v1894
        %v1896 = vrot.slane %v1784, 7
        %v1897 = vrot.slane %v1785, 7
        %v1898 = vsel %vm1033, %v1896, %v1897
        %v1903 = vmax.f32 %v1776, %v1889
        %v1904 = vmax.f32 %v1779, %v1892
        %v1905 = vmax.f32 %v1782, %v1895
        %v1906 = vmax.f32 %v1785, %v1898
        %v1911 = vrot.slane %v1776, 1
        %v1912 = vrot.slane %v1777, 1
        %v1913 = vsel %vm1078, %v1911, %v1912
        %v1914 = vrot.slane %v1779, 1
        %v1915 = vrot.slane %v1780, 1
        %v1916 = vsel %vm1078, %v1914, %v1915
        %v1917 = vrot.slane %v1782, 1
        %v1918 = vrot.slane %v1783, 1
        %v1919 = vsel %vm1078, %v1917, %v1918
        %v1920 = vrot.slane %v1785, 1
        %v1921 = vrot.slane %v1786, 1
        %v1922 = vsel %vm1078, %v1920, %v1921
        %v1927 = vmax.f32 %v1903, %v1913
        %v1928 = vmax.f32 %v1904, %v1916
        %v1929 = vmax.f32 %v1905, %v1919
        %v1930 = vmax.f32 %v1906, %v1922
        %v1931 = vrot.slane %v1775, 6
        %v1932 = vrot.slane %v1776, 6
        %v1933 = vsel %vm1283, %v1931, %v1932
        %v1934 = vrot.slane %v1778, 6
        %v1935 = vrot.slane %v1779, 6
        %v1936 = vsel %vm1283, %v1934, %v1935
        %v1937 = vrot.slane %v1781, 6
        %v1938 = vrot.slane %v1782, 6
        %v1939 = vsel %vm1283, %v1937, %v1938
        %v1940 = vrot.slane %v1784, 6
        %v1941 = vrot.slane %v1785, 6
        %v1942 = vsel %vm1283, %v1940, %v1941
        %v1947 = vmax.f32 %v1927, %v1933
        %v1948 = vmax.f32 %v1928, %v1936
        %v1949 = vmax.f32 %v1929, %v1939
        %v1950 = vmax.f32 %v1930, %v1942
        %v1951 = vrot.slane %v1776, 2
        %v1952 = vrot.slane %v1777, 2
        %v1953 = vsel %vm1394, %v1951, %v1952
        %v1954 = vrot.slane %v1779, 2
        %v1955 = vrot.slane %v1780, 2
        %v1956 = vsel %vm1394, %v1954, %v1955
        %v1957 = vrot.slane %v1782, 2
        %v1958 = vrot.slane %v1783, 2
        %v1959 = vsel %vm1394, %v1957, %v1958
        %v1960 = vrot.slane %v1785, 2
        %v1961 = vrot.slane %v1786, 2
        %v1962 = vsel %vm1394, %v1960, %v1961
        %v1967 = vmax.f32 %v1947, %v1953
        %v1968 = vmax.f32 %v1948, %v1956
        %v1969 = vmax.f32 %v1949, %v1959
        %v1970 = vmax.f32 %v1950, %v1962
        %v1971 = vmul.f32 %v1248, %v1967
        %v1972 = vmul.f32 %v1251, %v1968
        %v1973 = vmul.f32 %v1254, %v1969
        %v1974 = vmul.f32 %v1257, %v1970
        %v1975 = vsel %vm553, %v1971, 0.0
        %v1976 = vrot.slane %v1975, 4
        %v1977 = vadd.f32 %v1975, %v1976
        %v1978 = vrot.slane %v1977, 2
        %v1979 = vadd.f32 %v1977, %v1978
        %v1980 = vrot.slane %v1979, 1
        %v1981 = vadd.f32 %v1979, %v1980
        %v1982 = vsel %vm553, %v1972, 0.0
        %v1983 = vrot.slane %v1982, 4
        %v1984 = vadd.f32 %v1982, %v1983
        %v1985 = vrot.slane %v1984, 2
        %v1986 = vadd.f32 %v1984, %v1985
        %v1987 = vrot.slane %v1986, 1
        %v1988 = vadd.f32 %v1986, %v1987
        %v1989 = vsel %vm553, %v1973, 0.0
        %v1990 = vrot.slane %v1989, 4
        %v1991 = vadd.f32 %v1989, %v1990
        %v1992 = vrot.slane %v1991, 2
        %v1993 = vadd.f32 %v1991, %v1992
        %v1994 = vrot.slane %v1993, 1
        %v1995 = vadd.f32 %v1993, %v1994
        %v1996 = vsel %vm553, %v1974, 0.0
        %v1997 = vrot.slane %v1996, 4
        %v1998 = vadd.f32 %v1996, %v1997
        %v1999 = vrot.slane %v1998, 2
        %v2000 = vadd.f32 %v1998, %v1999
        %v2001 = vrot.slane %v2000, 1
        %v2002 = vadd.f32 %v2000, %v2001
        %v2003 = vsel %vm553, %v1248, 0.0
        %v2004 = vrot.slane %v2003, 4
        %v2005 = vadd.f32 %v2003, %v2004
        %v2006 = vrot.slane %v2005, 2
        %v2007 = vadd.f32 %v2005, %v2006
        %v2008 = vrot.slane %v2007, 1
        %v2009 = vadd.f32 %v2007, %v2008
        %v2010 = vsel %vm553, %v1251, 0.0
        %v2011 = vrot.slane %v2010, 4
        %v2012 = vadd.f32 %v2010, %v2011
        %v2013 = vrot.slane %v2012, 2
        %v2014 = vadd.f32 %v2012, %v2013
        %v2015 = vrot.slane %v2014, 1
        %v2016 = vadd.f32 %v2014, %v2015
        %v2017 = vsel %vm553, %v1254, 0.0
        %v2018 = vrot.slane %v2017, 4
        %v2019 = vadd.f32 %v2017, %v2018
        %v2020 = vrot.slane %v2019, 2
        %v2021 = vadd.f32 %v2019, %v2020
        %v2022 = vrot.slane %v2021, 1
        %v2023 = vadd.f32 %v2021, %v2022
        %v2024 = vsel %vm553, %v1257, 0.0
        %v2025 = vrot.slane %v2024, 4
        %v2026 = vadd.f32 %v2024, %v2025
        %v2027 = vrot.slane %v2026, 2
        %v2028 = vadd.f32 %v2026, %v2027
        %v2029 = vrot.slane %v2028, 1
        %v2030 = vadd.f32 %v2028, %v2029
        %v2031 = vmul.f32 %v1875, %v1260
        %v2032 = vmul.f32 %v1876, %v1263
        %v2033 = vmul.f32 %v1877, %v1266
        %v2034 = vmul.f32 %v1878, %v1269
        %v2035 = vsel %vm553, %v2031, 0.0
        %v2036 = vrot.slane %v2035, 4
        %v2037 = vadd.f32 %v2035, %v2036
        %v2038 = vrot.slane %v2037, 2
        %v2039 = vadd.f32 %v2037, %v2038
        %v2040 = vrot.slane %v2039, 1
        %v2041 = vadd.f32 %v2039, %v2040
        %v2042 = vsel %vm553, %v2032, 0.0
        %v2043 = vrot.slane %v2042, 4
        %v2044 = vadd.f32 %v2042, %v2043
        %v2045 = vrot.slane %v2044, 2
        %v2046 = vadd.f32 %v2044, %v2045
        %v2047 = vrot.slane %v2046, 1
        %v2048 = vadd.f32 %v2046, %v2047
        %v2049 = vsel %vm553, %v2033, 0.0
        %v2050 = vrot.slane %v2049, 4
        %v2051 = vadd.f32 %v2049, %v2050
        %v2052 = vrot.slane %v2051, 2
        %v2053 = vadd.f32 %v2051, %v2052
        %v2054 = vrot.slane %v2053, 1
        %v2055 = vadd.f32 %v2053, %v2054
        %v2056 = vsel %vm553, %v2034, 0.0
        %v2057 = vrot.slane %v2056, 4
        %v2058 = vadd.f32 %v2056, %v2057
        %v2059 = vrot.slane %v2058, 2
        %v2060 = vadd.f32 %v2058, %v2059
        %v2061 = vrot.slane %v2060, 1
        %v2062 = vadd.f32 %v2060, %v2061
        %v2063 = vsel %vm553, %v1260, 0.0
        %v2064 = vrot.slane %v2063, 4
        %v2065 = vadd.f32 %v2063, %v2064
        %v2066 = vrot.slane %v2065, 2
        %v2067 = vadd.f32 %v2065, %v2066
        %v2068 = vrot.slane %v2067, 1
        %v2069 = vadd.f32 %v2067, %v2068
        %v2070 = vsel %vm553, %v1263, 0.0
        %v2071 = vrot.slane %v2070, 4
        %v2072 = vadd.f32 %v2070, %v2071
        %v2073 = vrot.slane %v2072, 2
        %v2074 = vadd.f32 %v2072, %v2073
        %v2075 = vrot.slane %v2074, 1
        %v2076 = vadd.f32 %v2074, %v2075
        %v2077 = vsel %vm553, %v1266, 0.0
        %v2078 = vrot.slane %v2077, 4
        %v2079 = vadd.f32 %v2077, %v2078
        %v2080 = vrot.slane %v2079, 2
        %v2081 = vadd.f32 %v2079, %v2080
        %v2082 = vrot.slane %v2081, 1
        %v2083 = vadd.f32 %v2081, %v2082
        %v2084 = vsel %vm553, %v1269, 0.0
        %v2085 = vrot.slane %v2084, 4
        %v2086 = vadd.f32 %v2084, %v2085
        %v2087 = vrot.slane %v2086, 2
        %v2088 = vadd.f32 %v2086, %v2087
        %v2089 = vrot.slane %v2088, 1
        %v2090 = vadd.f32 %v2088, %v2089
        %vm2095 = vcmask 1041409
        %v2096 = vsel %vm2095, %v1988, %v1981
        %vm2097 = vcmask 1042434
        %v2098 = vsel %vm2097, %v1995, %v2096
        %vm2099 = vcmask 1043459
        %v2100 = vsel %vm2099, %v2002, %v2098
        %vm2106 = vcmask 1045509
        %v2107 = vsel %vm2106, %v2016, %v2009
        %vm2108 = vcmask 1046534
        %v2109 = vsel %vm2108, %v2023, %v2107
        %vm2110 = vcmask 1047559
        %v2111 = vsel %vm2110, %v2030, %v2109
        %v2117 = vsel %vm2095, %v2048, %v2041
        %v2118 = vsel %vm2097, %v2055, %v2117
        %v2119 = vsel %vm2099, %v2062, %v2118
        %v2125 = vsel %vm2106, %v2076, %v2069
        %v2126 = vsel %vm2108, %v2083, %v2125
        %v2127 = vsel %vm2110, %v2090, %v2126
        %vm2129 = vcmask 1043456
        %v2130 = vsel %vm2129, %v2100, %v2111
        %v2131 = vsel %vm2129, %v2119, %v2127
        %v2132 = vsel %vm553, %v2130, 0.0
        %2133 = vadd.xlane.f32.xlu0 %v2132
        %v2134 = vpop.xlane.xlu0 %2133
        %v2135 = vsel %vm553, %v2131, 0.0
        %2136 = vadd.xlane.f32.xlu0 %v2135
        %v2137 = vpop.xlane.xlu0 %2136
        %v2140 = vlaneseq
        %v2141 = vand.u32 %v2140, 127
        %v2142 = vlaneseq
        %v2143 = vshrl.u32 %v2142, 7
        %v2144 = vsub.s32 %v2141, %v2143
        %v2145 = vrot.slane %v2134, %v2144
        %v2146 = vadd.s32 %v2141, 4294967288
        %v2147 = vlaneseq
        %v2148 = vshrl.u32 %v2147, 7
        %v2149 = vsub.s32 %v2146, %v2148
        %v2150 = vrot.slane %v2137, %v2149
        %vm2151 = vcmask 130112
        %v2152 = vsel %vm2151, %v2150, %v2145
        %vm2154 = vcmask 122880
        %2155 = vst.msk [vmem:[%s524] sm:$0x1] %vm2154, %v2152
        %s2156 = sand.u32 %s246, 1
        %s2157 = scalar_lea.sflag [#allocation4], %s2156
        %s2158 = sand.u32 %s246, 1
        %s2159 = scalar_lea.vmem [#allocation13], %s2158
        // Predicated region
        $region69: #{tpu_custom_call.1} parent=43 // pred_check
          %p2160 = pneg %p256
        $region70: #{tpu_custom_call.1} parent=43 // pred_check_branch
          %2162 = sbr.rel (%p2160) target = $region72
        $region71: #{tpu_custom_call.1} parent=43 // pred_region
          %s2164 = ssub.s32 16, 16
          %2165 = vsyncadd %s2157, %s2164
          %s2166 = smul.addr %s36, 2
          %s2167 = sadd.s32 %s37, %s2166
          %s2168 = smul.addr %s2167, 16
          %s2169 = scalar_lea.hbm %s6, %s2168
          %s2171 = sshll.u32 %s2159, 4
          %s2172 = int_to_ptr.vmem [resolvable:$true] %s2171
          %2174 = dma.vmem_to_hbm [thread:$0]  %s2172, 16, %s2169, %s2157
        $region72: #{tpu_custom_call.1} parent=43 // pred_fallthru
          _
      $region44: #{tpu_custom_call.1} parent=5 // pred_fallthru
        _
      %p2175 = scmp.le.s32.totalorder 2, %s27
      // Predicated region
      $region73: #{tpu_custom_call.1} parent=5 // pred_check
        %p2176 = pneg %p2175
      $region74: #{tpu_custom_call.1} parent=5 // pred_check_branch
        %2178 = sbr.rel (%p2176) target = $region76
      $region75: #{tpu_custom_call.1} parent=5 // pred_region
        %s2179 = ssub.s32 %s27, 2
        // Predicated region
        $region77: #{tpu_custom_call.1} parent=75 // pred_check
          %p2180 = pneg %p262
        $region78: #{tpu_custom_call.1} parent=75 // pred_check_branch
          %2182 = sbr.rel (%p2180) target = $region80
        $region79: #{tpu_custom_call.1} parent=75 // pred_region
          %s2183 = sand.u32 %s247, 1
          %s2184 = scalar_lea.sflag [#allocation4], %s2183
          %s2185 = sand.u32 %s247, 1
          %s2186 = scalar_lea.vmem [#allocation13], %s2185
          %2187 = dma.done %s2184, 16
        $region80: #{tpu_custom_call.1} parent=75 // pred_fallthru
          _
      $region76: #{tpu_custom_call.1} parent=5 // pred_fallthru
        _
    $region6: #{tpu_custom_call.1} parent=1 // loop_footer
      %s31 = sadd.s32 1, %s27
    $region7: #{tpu_custom_call.1} parent=1 // loop_footer_branch
      %26 = sbr.rel target = $region3
    $region8: #{tpu_custom_call.1} parent=1 // loop_exit
      _
    %2188 = vsyncpa [#allocation3], 1
    %s2189 = scalar_lea.sflag [#allocation3], 1
    %2190 = vsyncpa %s2189, 1
    %2191 = vsyncpa [#allocation6], 1
    %s2192 = scalar_lea.sflag [#allocation6], 1
    %2193 = vsyncpa %s2192, 1
    %2194 = vsyncpa [#allocation9], 1
    %s2195 = scalar_lea.sflag [#allocation9], 1
    %2196 = vsyncpa %s2195, 1
    %2197 = vsyncpa [#allocation12], 1
    %s2198 = scalar_lea.sflag [#allocation12], 1
    %2199 = vsyncpa %s2198, 1
    %2200 = vsyncpa [#allocation4], 1
    %s2201 = scalar_lea.sflag [#allocation4], 1
    %2202 = vsyncpa %s2201, 1

</llo_original>
